<compile_context>
chip_gen: v5e
topology: v5e:2x2
jax: 0.10.0
libtpu: 0.0.40
codegen_flags: <defaults>
</compile_context>

<pallas_src>
import functools

import jax
import jax.numpy as jnp
from jax import lax
from jax.experimental import pallas as pl
from jax.experimental.pallas import tpu as pltpu

N_BINS = 15
BIN_LANES = 128   # bins live in lanes [0, n_bins); padded to one lane width
STAT_ROWS = 8     # row 0 = count, row 1 = conf-sum, row 2 = acc-sum, rest pad


def _round_up(x, m):
    return ((x + m - 1) // m) * m


def _ece_bin_stats_kernel(labels_ref, logits_ref, out_ref, *,
                          n_bins, n_valid, tile_n, tiles_per_shard):
    s = pl.program_id(0)   # shard axis ("parallel": both TCs on v7x)
    t = pl.program_id(1)   # tile-within-shard axis ("arbitrary": reduction)

    @pl.when(t == 0)
    def _init():
        out_ref[...] = jnp.zeros_like(out_ref)

    x = logits_ref[...]                                      # native dtype (TN, C)
    tn, c = x.shape

    # --- confidence & prediction straight from the logits (no probs tensor).
    # max / compare / argmax stay in the input dtype (bf16 on v6e/v7x inputs);
    # only the exp argument is cast to f32.
    m = jnp.max(x, axis=-1, keepdims=True)                    # (TN, 1)
    col = lax.broadcasted_iota(jnp.int32, (tn, c), 1)
    pred = jnp.min(jnp.where(x >= m, col, c),
                   axis=-1, keepdims=True)                    # first argmax
    ex = jnp.exp((x - m).astype(jnp.float32))                 # (TN, C) f32
    denom = jnp.sum(ex, axis=-1, keepdims=True)
    conf = pl.reciprocal(denom, approx=False)                 # max softmax prob
    acc = (pred == labels_ref[...]).astype(jnp.float32)       # (TN, 1)

    # --- mask padded rows using the global row index ---
    row0 = (s * tiles_per_shard + t) * tile_n
    row = row0 + lax.broadcasted_iota(jnp.int32, (tn, 1), 0)
    valid = (row < n_valid).astype(jnp.float32)               # (TN, 1)

    # --- single-compare binning: bin j covers (j/n_bins, (j+1)/n_bins] ---
    bin_idx = jnp.ceil(conf * n_bins).astype(jnp.int32) - 1
    bin_idx = jnp.clip(bin_idx, 0, n_bins - 1)

    lane = lax.broadcasted_iota(jnp.int32, (tn, BIN_LANES), 1)
    onehot = (lane == bin_idx).astype(jnp.float32)            # (TN, 128)

    # stats matrix (TN, 8): col 0 = 1[valid], col 1 = conf, col 2 = acc,
    # padded rows contribute exactly zero to every bin.
    scol = lax.broadcasted_iota(jnp.int32, (tn, STAT_ROWS), 1)
    stats = jnp.where(scol == 0, valid,
            jnp.where(scol == 1, conf * valid,
            jnp.where(scol == 2, acc * valid, 0.0)))          # (TN, 8) f32

    # --- per-bin partials on the (otherwise idle) MXU:
    # contract the row axis: stats^T @ onehot -> (8, 128), f32 accumulation.
    upd = lax.dot_general(stats, onehot,
                          dimension_numbers=(((0,), (0,)), ((), ())),
                          preferred_element_type=jnp.float32)
    out_ref[...] += upd[None, :, :]


def ece_loss(labels, logits, *, n_bins=N_BINS, percent=True, n_shards=2,
             max_tile_n=8192, min_tile_n=128, tile_bytes=4 * 1024 * 1024):
    """Pallas ECE.  labels: (N,) int, logits: (N, C) float.  Returns a scalar."""
    N, C = logits.shape
    assert n_bins <= BIN_LANES
    labels2 = labels.reshape(N, 1).astype(jnp.int32)

    # Tile sizing: rows-first.  For small C the byte cap is irrelevant and the
    # tile grows to max_tile_n rows (amortizing per-grid-step overhead); for
    # large C the ~4 MiB per-logits-buffer cap keeps double-buffered inputs
    # plus the f32 / (TN,128) onehot intermediates inside the 40 MiB VMEM
    # budget we request (safe on v5e/v6e/v7x).  Logits are streamed in their
    # native dtype (bf16 stays bf16 in HBM).
    itemsize = jnp.dtype(logits.dtype).itemsize
    cap_rows = max(8, ((tile_bytes // max(1, C * itemsize)) // 8) * 8)
    need_rows = _round_up(max(1, -(-N // n_shards)), 8)
    tile_cap = min(max_tile_n, cap_rows)                       # VMEM-bound rows
    tile_n = min(tile_cap, max(need_rows, min(min_tile_n, tile_cap)))
    tiles_per_shard = -(-N // (n_shards * tile_n))
    n_pad = n_shards * tiles_per_shard * tile_n

    if n_pad != N:   # pad; padded rows are masked inside the kernel
        logits = jnp.pad(logits, ((0, n_pad - N), (0, 0)))
        labels2 = jnp.pad(labels2, ((0, n_pad - N), (0, 0)))

    kernel = functools.partial(_ece_bin_stats_kernel, n_bins=n_bins, n_valid=N,
                               tile_n=tile_n, tiles_per_shard=tiles_per_shard)

    partials = pl.pallas_call(
        kernel,
        out_shape=jax.ShapeDtypeStruct((n_shards, STAT_ROWS, BIN_LANES),
                                       jnp.float32),
        grid_spec=pltpu.PrefetchScalarGridSpec(
            num_scalar_prefetch=0,
            grid=(n_shards, tiles_per_shard),
            in_specs=[
                # labels (N_pad, 1) int32
                pl.BlockSpec((tile_n, 1),
                             lambda s, t: (s * tiles_per_shard + t, 0)),
                # logits (N_pad, C), native dtype; default double buffering.
                pl.BlockSpec((tile_n, C),
                             lambda s, t: (s * tiles_per_shard + t, 0)),
            ],
            out_specs=pl.BlockSpec((1, STAT_ROWS, BIN_LANES),
                                   lambda s, t: (s, 0, 0)),
        ),
        compiler_params=pltpu.CompilerParams(
            dimension_semantics=("parallel", "arbitrary"),
            vmem_limit_bytes=40 * 1024 * 1024,
        ),
    )(labels2, logits)

    # Final (tiny, O(n_bins)) reduction in plain JAX: shard partials -> ECE.
    # TODO(synk): the PyTorch module returns a host Python float via .item();
    # here the scalar stays a JAX array (caller can call float()).
    stats = jnp.sum(partials, axis=0)                         # (8, 128)
    cnt = stats[0, :n_bins]
    csum = stats[1, :n_bins]
    asum = stats[2, :n_bins]
    total = jnp.float32(N)
    prop = cnt / total
    safe = jnp.maximum(cnt, 1.0)
    gap = jnp.where(cnt > 0, jnp.abs(csum / safe - asum / safe) * prop, 0.0)
    ece = jnp.sum(gap)
    return ece * 100.0 if percent else ece


def _ece_ref(labels, logits, n_bins=N_BINS, percent=True):
    """Pure-JAX reference matching the PyTorch module semantics."""
    probs = jax.nn.softmax(logits.astype(jnp.float32), axis=-1)
    conf = jnp.max(probs, axis=-1)
    pred = jnp.argmax(probs, axis=-1)
    acc = (pred == labels).astype(jnp.float32)
    bounds = jnp.linspace(0.0, 1.0, n_bins + 1)
    ece = jnp.zeros(())
    for j in range(n_bins):
        in_bin = (conf > bounds[j]) & (conf <= bounds[j + 1])
        cnt = jnp.sum(in_bin.astype(jnp.float32))
        prop = cnt / conf.shape[0]
        safe = jnp.maximum(cnt, 1.0)
        acc_in = jnp.sum(jnp.where(in_bin, acc, 0.0)) / safe
        conf_in = jnp.sum(jnp.where(in_bin, conf, 0.0)) / safe
        ece = ece + jnp.where(cnt > 0, jnp.abs(conf_in - acc_in) * prop, 0.0)
    return 100.0 * ece if percent else ece


if __name__ == "__main__":
    key = jax.random.PRNGKey(0)
    k1, k2 = jax.random.split(key)

    # primary small test (matches the module's expected use: logits + labels)
    N, C = 64, 16
    logits = jax.random.normal(k1, (N, C), dtype=jnp.float32) * 3.0
    labels = jax.random.randint(k2, (N,), 0, C, dtype=jnp.int32)

    out = ece_loss(labels, logits, percent=True)
    out = jax.block_until_ready(out)
    ref = _ece_ref(labels, logits, percent=True)
    assert jnp.allclose(out, ref, atol=1e-4, rtol=1e-4), (out, ref)

    # exercise the padded / masked path (N not a multiple of the tiling)
    N2, C2 = 200, 10
    logits2 = jax.random.normal(k1, (N2, C2), dtype=jnp.float32) * 2.0
    labels2 = jax.random.randint(k2, (N2,), 0, C2, dtype=jnp.int32)
    out2 = jax.block_until_ready(ece_loss(labels2, logits2, percent=True))
    ref2 = _ece_ref(labels2, logits2, percent=True)
    assert jnp.allclose(out2, ref2, atol=1e-4, rtol=1e-4), (out2, ref2)

    print("KERNEL_OK")
</pallas_src>

<mosaic_0001>
module attributes {stable_mosaic.version = 11 : i64} {
  func.func @_ece_bin_stats_kernel(%arg0: i32, %arg1: i32, %arg2: memref<128x1xi32, #tpu.memory_space<vmem>>, %arg3: memref<128x16xf32, #tpu.memory_space<vmem>>, %arg4: memref<1x8x128xf32, #tpu.memory_space<vmem>>) attributes {dimension_semantics = [#tpu.dimension_semantics<parallel>, #tpu.dimension_semantics<arbitrary>], iteration_bounds = array<i64: 2, 1>, scalar_prefetch = 0 : i64, scratch_operands = 0 : i64, tpu.core_type = #tpu.core_type<tc>, window_params = [{transform_indices = @transform_0, window_bounds = array<i64: 128, 1>}, {transform_indices = @transform_1, window_bounds = array<i64: 128, 16>}, {transform_indices = @transform_2, window_bounds = array<i64: 1, 8, 128>}]} {
    %c0_i32 = arith.constant 0 : i32
    %0 = arith.cmpi eq, %arg1, %c0_i32 : i32
    %1 = arith.extui %0 : i1 to i32
    %c0_i32_0 = arith.constant 0 : i32
    %2 = arith.cmpi ne, %1, %c0_i32_0 : i32
    scf.if %2 {
      %cst_19 = arith.constant 0.000000e+00 : f32
      %72 = vector.broadcast %cst_19 : f32 to vector<1x8x128xf32>
      %c0_20 = arith.constant 0 : index
      %c0_21 = arith.constant 0 : index
      %c0_22 = arith.constant 0 : index
      %73 = vector.load %arg4[%c0_20, %c0_21, %c0_22] : memref<1x8x128xf32, #tpu.memory_space<vmem>>, vector<1x8x128xf32>
      tpu.vector_store %arg4[%c0_20, %c0_21, %c0_22], %72 {strides = array<i32>} : memref<1x8x128xf32, #tpu.memory_space<vmem>>, vector<1x8x128xf32>,
    } else {
    }
    %c0 = arith.constant 0 : index
    %c0_1 = arith.constant 0 : index
    %3 = vector.load %arg3[%c0, %c0_1] : memref<128x16xf32, #tpu.memory_space<vmem>>, vector<128x16xf32>
    %cst = arith.constant dense<0xFF800000> : vector<128xf32>
    %4 = vector.multi_reduction <maximumf>, %3, %cst [1] : vector<128x16xf32> to vector<128xf32>
    %5 = vector.shape_cast %4 : vector<128xf32> to vector<128x1xf32>
    %6 = tpu.iota {dimensions = array<i32: 1>} : vector<128x16xi32>
    %7 = vector.broadcast %5 : vector<128x1xf32> to vector<128x16xf32>
    %8 = arith.cmpf oge, %3, %7 : vector<128x16xf32>
    %c16_i32 = arith.constant 16 : i32
    %9 = vector.broadcast %c16_i32 : i32 to vector<128x16xi32>
    %10 = arith.select %8, %6, %9 : vector<128x16xi1>, vector<128x16xi32>
    %cst_2 = arith.constant dense<2147483647> : vector<128xi32>
    %11 = vector.multi_reduction <minsi>, %10, %cst_2 [1] : vector<128x16xi32> to vector<128xi32>
    %12 = vector.shape_cast %11 : vector<128xi32> to vector<128x1xi32>
    %13 = vector.broadcast %5 : vector<128x1xf32> to vector<128x16xf32>
    %14 = arith.subf %3, %13 : vector<128x16xf32>
    %15 = math.exp %14 : vector<128x16xf32>
    %cst_3 = arith.constant dense<0.000000e+00> : vector<128xf32>
    %16 = vector.multi_reduction <add>, %15, %cst_3 [1] : vector<128x16xf32> to vector<128xf32>
    %17 = vector.shape_cast %16 : vector<128xf32> to vector<128x1xf32>
    %18 = tpu.reciprocal %17 : vector<128x1xf32> -> vector<128x1xf32>
    %c0_4 = arith.constant 0 : index
    %c0_5 = arith.constant 0 : index
    %19 = vector.load %arg2[%c0_4, %c0_5] : memref<128x1xi32, #tpu.memory_space<vmem>>, vector<128x1xi32>
    %20 = arith.cmpi eq, %12, %19 : vector<128x1xi32>
    %21 = arith.extui %20 : vector<128x1xi1> to vector<128x1xi32>
    %22 = arith.sitofp %21 : vector<128x1xi32> to vector<128x1xf32>
    %c1_i32 = arith.constant 1 : i32
    %23 = arith.muli %arg0, %c1_i32 : i32
    %24 = arith.addi %23, %arg1 : i32
    %c128_i32 = arith.constant 128 : i32
    %25 = arith.muli %24, %c128_i32 : i32
    %26 = tpu.iota {dimensions = array<i32: 0>} : vector<128x1xi32>
    %27 = vector.broadcast %25 : i32 to vector<128x1xi32>
    %28 = arith.addi %27, %26 : vector<128x1xi32>
    %c64_i32 = arith.constant 64 : i32
    %29 = vector.broadcast %c64_i32 : i32 to vector<128x1xi32>
    %30 = arith.cmpi slt, %28, %29 : vector<128x1xi32>
    %31 = arith.extui %30 : vector<128x1xi1> to vector<128x1xi32>
    %32 = arith.sitofp %31 : vector<128x1xi32> to vector<128x1xf32>
    %cst_6 = arith.constant 1.500000e+01 : f32
    %33 = vector.broadcast %cst_6 : f32 to vector<128x1xf32>
    %34 = arith.mulf %18, %33 : vector<128x1xf32>
    %35 = math.ceil %34 : vector<128x1xf32>
    %36 = arith.fptosi %35 : vector<128x1xf32> to vector<128x1xi32>
    %c1_i32_7 = arith.constant 1 : i32
    %37 = vector.broadcast %c1_i32_7 : i32 to vector<128x1xi32>
    %38 = arith.subi %36, %37 : vector<128x1xi32>
    %c0_i32_8 = arith.constant 0 : i32
    %c14_i32 = arith.constant 14 : i32
    %39 = vector.broadcast %c0_i32_8 : i32 to vector<128x1xi32>
    %40 = arith.maxsi %39, %38 : vector<128x1xi32>
    %41 = vector.broadcast %c14_i32 : i32 to vector<128x1xi32>
    %42 = arith.minsi %41, %40 : vector<128x1xi32>
    %43 = tpu.iota {dimensions = array<i32: 1>} : vector<128x128xi32>
    %44 = vector.broadcast %42 : vector<128x1xi32> to vector<128x128xi32>
    %45 = arith.cmpi eq, %43, %44 : vector<128x128xi32>
    %46 = arith.extui %45 : vector<128x128xi1> to vector<128x128xi32>
    %47 = arith.sitofp %46 : vector<128x128xi32> to vector<128x128xf32>
    %48 = tpu.iota {dimensions = array<i32: 1>} : vector<128x8xi32>
    %c0_i32_9 = arith.constant 0 : i32
    %49 = vector.broadcast %c0_i32_9 : i32 to vector<128x8xi32>
    %50 = arith.cmpi eq, %48, %49 : vector<128x8xi32>
    %c1_i32_10 = arith.constant 1 : i32
    %51 = vector.broadcast %c1_i32_10 : i32 to vector<128x8xi32>
    %52 = arith.cmpi eq, %48, %51 : vector<128x8xi32>
    %53 = arith.mulf %18, %32 : vector<128x1xf32>
    %c2_i32 = arith.constant 2 : i32
    %54 = vector.broadcast %c2_i32 : i32 to vector<128x8xi32>
    %55 = arith.cmpi eq, %48, %54 : vector<128x8xi32>
    %56 = arith.mulf %22, %32 : vector<128x1xf32>
    %cst_11 = arith.constant 0.000000e+00 : f32
    %57 = vector.shape_cast %56 : vector<128x1xf32> to vector<128x1xf32>
    %58 = vector.broadcast %57 : vector<128x1xf32> to vector<128x8xf32>
    %59 = vector.broadcast %cst_11 : f32 to vector<128x8xf32>
    %60 = arith.select %55, %58, %59 : vector<128x8xi1>, vector<128x8xf32>
    %61 = vector.shape_cast %53 : vector<128x1xf32> to vector<128x1xf32>
    %62 = vector.broadcast %61 : vector<128x1xf32> to vector<128x8xf32>
    %63 = arith.select %52, %62, %60 : vector<128x8xi1>, vector<128x8xf32>
    %64 = vector.shape_cast %32 : vector<128x1xf32> to vector<128x1xf32>
    %65 = vector.broadcast %64 : vector<128x1xf32> to vector<128x8xf32>
    %66 = arith.select %50, %65, %63 : vector<128x8xi1>, vector<128x8xf32>
    %cst_12 = arith.constant dense<0.000000e+00> : vector<8x128xf32>
    %67 = tpu.matmul %66, %47, %cst_12 {dimension_numbers = #tpu.dot_dimension_numbers<[0], [0], [1], [1], [0, 1, 1, 1], [], []>} : vector<128x8xf32>, vector<128x128xf32>, vector<8x128xf32> -> vector<8x128xf32>
    %c0_13 = arith.constant 0 : index
    %c0_14 = arith.constant 0 : index
    %c0_15 = arith.constant 0 : index
    %68 = vector.load %arg4[%c0_13, %c0_14, %c0_15] : memref<1x8x128xf32, #tpu.memory_space<vmem>>, vector<1x8x128xf32>
    %69 = vector.shape_cast %67 : vector<8x128xf32> to vector<1x8x128xf32>
    %70 = arith.addf %68, %69 : vector<1x8x128xf32>
    %c0_16 = arith.constant 0 : index
    %c0_17 = arith.constant 0 : index
    %c0_18 = arith.constant 0 : index
    %71 = vector.load %arg4[%c0_16, %c0_17, %c0_18] : memref<1x8x128xf32, #tpu.memory_space<vmem>>, vector<1x8x128xf32>
    tpu.vector_store %arg4[%c0_16, %c0_17, %c0_18], %70 {strides = array<i32>} : memref<1x8x128xf32, #tpu.memory_space<vmem>>, vector<1x8x128xf32>,
    return
  }
  func.func @transform_0(%arg0: i32, %arg1: i32) -> (i32, i32) {
    %c1_i32 = arith.constant 1 : i32
    %0 = arith.muli %arg0, %c1_i32 : i32
    %1 = arith.addi %0, %arg1 : i32
    %c0_i32 = arith.constant 0 : i32
    %c0_i32_0 = arith.constant 0 : i32
    return %1, %c0_i32 : i32, i32
  }
  func.func @transform_1(%arg0: i32, %arg1: i32) -> (i32, i32) {
    %c1_i32 = arith.constant 1 : i32
    %0 = arith.muli %arg0, %c1_i32 : i32
    %1 = arith.addi %0, %arg1 : i32
    %c0_i32 = arith.constant 0 : i32
    %c0_i32_0 = arith.constant 0 : i32
    return %1, %c0_i32 : i32, i32
  }
  func.func @transform_2(%arg0: i32, %arg1: i32) -> (i32, i32, i32) {
    %c0_i32 = arith.constant 0 : i32
    %c0_i32_0 = arith.constant 0 : i32
    %c0_i32_1 = arith.constant 0 : i32
    return %arg0, %c0_i32, %c0_i32_0 : i32, i32, i32
  }
}

</mosaic_0001>

<llo_original>
// kernel: tpu_custom_call.1
$region0: #{tpu_custom_call.1}
  #allocation0 [shape = 'u32[]', space=smem, size = 0x4, offset = 0x4, fixed_abs, tag = 'smem constant byte address 0x4 - core index']
  #allocation1 [shape = 'u32[72,128]{1,0:T(1,128)}', space=vmem, size = 0x9000, scoped, tag = 'internal scratch']
  %s0 = inlined_call_operand.vmem [shape: s32[256,1], index: 0, kind: input, shape index: {}]
  %s1 = inlined_call_operand.vmem [shape: f32[256,16], index: 1, kind: input, shape index: {}]
  %s2 = inlined_call_operand.hbm [shape: f32[2,8,128], index: 2, kind: output, shape index: {}]
  %s3 = sld [smem:[#allocation0]]
  $region45: #{tpu_custom_call.1} parent=0
    _
  %s5 = ssub.s32 1, %s3
  %s6 = scalar_select 0, %s5, %s3
  $region1: #{tpu_custom_call.1} parent=0
    #allocation2 [shape = 'u8[8192]{0}', space=vmem, size = 0x2000, scoped, tag = 'output window, operand 0']
    #allocation3 [shape = 's32[2]{0}', space=sflag, size = 0x8, scoped, tag = 'scoped memory for tpu_custom_call.1']
    %7 = vsyncpa [#allocation3], 0
    %s8 = scalar_lea.sflag [#allocation3], 1
    %9 = vsyncpa %s8, 0
    loop: start=0, step=1, limit=4
    $region2: #{tpu_custom_call.1} parent=1 // loop_pre_header
      _
    $region3: #{tpu_custom_call.1} parent=1 // loop_header
      %s11 = sphi 0, %s15
      %p12 = scmp.ge.s32.totalorder %s11, 4
      %s18 = sphi 0, %s30
      %s19 = sphi 0, %s26
      %s20 = sphi 0, %s18
      %s21 = sphi 0, %s19
      %s22 = sphi 0, %s20
      %s23 = sphi 0, %s21
      %s35 = sphi 0, %s37
      %s38 = sphi 0, %s35
      %s39 = sphi 0, %s38
      %s55 = sphi 0, %s39
      %s63 = sphi 0, %s65
      %s66 = sphi 0, %s63
      %s67 = sphi 0, %s66
      %s83 = sphi 0, %s67
      %s89 = sphi 0, %s91
      %s92 = sphi 0, %s89
      %s93 = sphi 0, %s92
      %s109 = sphi 0, %s93
    $region4: #{tpu_custom_call.1} parent=1 // loop_header_branch
      %14 = sbr.rel (%p12) target = $region8
    $region5: #{tpu_custom_call.1} parent=1 // loop_body
      %s16 = ssub.s32 %s11, 1
      %s17 = ssub.s32 %s11, 2
      %s24 = sadd.s32 1, %s19
      %p25 = scmp.ge.s32.totalorder %s24, 1
      %s26 = scalar_select %p25, 0, %s24
      %s27 = sadd.s32 1, %s18
      %s28 = scalar_select %p25, %s27, %s18
      %p29 = scmp.ge.s32.totalorder %s28, 2
      %s30 = scalar_select %p29, 0, %s28
      %s31 = sadd.s32 %s18, %s19
      %s32 = sadd.s32 %s30, %s26
      %s33 = ssub.s32 %s31, %s32
      %p34 = scmp.eq.s32.totalorder %s33, 0
      %s36 = sadd.s32 %s35, 1
      %s37 = scalar_select %p34, %s35, %s36
      %p40 = pneg %p34
      %p41 = scmp.eq.s32.totalorder %s11, 1
      %p42 = por %p40, %p41
      %p43 = scmp.ne.s32.totalorder %s35, %s38
      %p44 = scmp.eq.s32.totalorder %s11, 0
      %p45 = por %p43, %p44
      %p46 = scmp.ne.s32.totalorder %s35, %s38
      %p47 = scmp.eq.s32.totalorder %s16, 1
      %p48 = por %p46, %p47
      %p49 = scmp.ne.s32.totalorder %s38, %s39
      %p50 = scmp.eq.s32.totalorder %s16, 0
      %p51 = por %p49, %p50
      %p52 = scmp.ne.s32.totalorder %s38, %s39
      %p53 = scmp.eq.s32.totalorder %s17, 1
      %p54 = por %p52, %p53
      %p56 = scmp.ne.s32.totalorder %s39, %s55
      %p57 = scmp.eq.s32.totalorder %s17, 0
      %p58 = por %p56, %p57
      %s59 = sadd.s32 %s18, %s19
      %s60 = sadd.s32 %s30, %s26
      %s61 = ssub.s32 %s59, %s60
      %p62 = scmp.eq.s32.totalorder %s61, 0
      %s64 = sadd.s32 %s63, 1
      %s65 = scalar_select %p62, %s63, %s64
      %p68 = pneg %p62
      %p69 = scmp.eq.s32.totalorder %s11, 1
      %p70 = por %p68, %p69
      %p71 = scmp.ne.s32.totalorder %s63, %s66
      %p72 = scmp.eq.s32.totalorder %s11, 0
      %p73 = por %p71, %p72
      %p74 = scmp.ne.s32.totalorder %s63, %s66
      %p75 = scmp.eq.s32.totalorder %s16, 1
      %p76 = por %p74, %p75
      %p77 = scmp.ne.s32.totalorder %s66, %s67
      %p78 = scmp.eq.s32.totalorder %s16, 0
      %p79 = por %p77, %p78
      %p80 = scmp.ne.s32.totalorder %s66, %s67
      %p81 = scmp.eq.s32.totalorder %s17, 1
      %p82 = por %p80, %p81
      %p84 = scmp.ne.s32.totalorder %s67, %s83
      %p85 = scmp.eq.s32.totalorder %s17, 0
      %p86 = por %p84, %p85
      %s87 = ssub.s32 %s18, %s30
      %p88 = scmp.eq.s32.totalorder %s87, 0
      %s90 = sadd.s32 %s89, 1
      %s91 = scalar_select %p88, %s89, %s90
      %p94 = pneg %p88
      %p95 = scmp.eq.s32.totalorder %s11, 1
      %p96 = por %p94, %p95
      %p97 = scmp.ne.s32.totalorder %s89, %s92
      %p98 = scmp.eq.s32.totalorder %s11, 0
      %p99 = por %p97, %p98
      %p100 = scmp.ne.s32.totalorder %s89, %s92
      %p101 = scmp.eq.s32.totalorder %s16, 1
      %p102 = por %p100, %p101
      %p103 = scmp.ne.s32.totalorder %s92, %s93
      %p104 = scmp.eq.s32.totalorder %s16, 0
      %p105 = por %p103, %p104
      %p106 = scmp.ne.s32.totalorder %s92, %s93
      %p107 = scmp.eq.s32.totalorder %s17, 1
      %p108 = por %p106, %p107
      %p110 = scmp.ne.s32.totalorder %s93, %s109
      %p111 = scmp.eq.s32.totalorder %s17, 0
      %p112 = por %p110, %p111
      %p113 = scmp.le.s32.totalorder 1, %s11
      %p114 = scmp.lt.s32.totalorder %s11, 3
      %p115 = pnand %p113, %p114
      %p116 = pneg %p115
      // Predicated region
      $region9: #{tpu_custom_call.1} parent=5 // pred_check
        _
      $region10: #{tpu_custom_call.1} parent=5 // pred_check_branch
        %118 = sbr.rel (%p115) target = $region12
      $region11: #{tpu_custom_call.1} parent=5 // pred_region
        %s119 = ssub.s32 %s11, 1
      $region12: #{tpu_custom_call.1} parent=5 // pred_fallthru
        _
      %p120 = scmp.lt.s32.totalorder %s11, 2
      // Predicated region
      $region13: #{tpu_custom_call.1} parent=5 // pred_check
        %p121 = pneg %p120
      $region14: #{tpu_custom_call.1} parent=5 // pred_check_branch
        %123 = sbr.rel (%p121) target = $region16
      $region15: #{tpu_custom_call.1} parent=5 // pred_region
        // Predicated region
        $region17: #{tpu_custom_call.1} parent=15 // pred_check
          %p124 = pneg %p45
        $region18: #{tpu_custom_call.1} parent=15 // pred_check_branch
          %126 = sbr.rel (%p124) target = $region20
        $region19: #{tpu_custom_call.1} parent=15 // pred_region
          %s127 = sadd.s32 %s18, %s19
          %s128 = smul.u32 16, %s127
          %p129 = scmp.lt.s32.totalorder %s128, 31
          %s130 = scalar_select %p129, %s128, 31
          %s131 = smul.addr %s130, 8
          %s132 = scalar_lea.vmem %s0, %s131
          %s133 = sadd.s32 %s18, %s19
          %s134 = smul.u32 16, %s133
        $region20: #{tpu_custom_call.1} parent=15 // pred_fallthru
          _
        // Predicated region
        $region21: #{tpu_custom_call.1} parent=15 // pred_check
          %p135 = pneg %p73
        $region22: #{tpu_custom_call.1} parent=15 // pred_check_branch
          %137 = sbr.rel (%p135) target = $region24
        $region23: #{tpu_custom_call.1} parent=15 // pred_region
          %s138 = sadd.s32 %s18, %s19
          %s139 = smul.u32 16, %s138
          %p140 = scmp.lt.s32.totalorder %s139, 31
          %s141 = scalar_select %p140, %s139, 31
          %s142 = smul.addr %s141, 8
          %s143 = scalar_lea.vmem %s1, %s142
          %s144 = sadd.s32 %s18, %s19
          %s145 = smul.u32 16, %s144
        $region24: #{tpu_custom_call.1} parent=15 // pred_fallthru
          _
      $region16: #{tpu_custom_call.1} parent=5 // pred_fallthru
        _
      %p146 = scmp.le.s32.totalorder 1, %s11
      %p147 = scmp.lt.s32.totalorder %s11, 3
      %p148 = pnand %p146, %p147
      %p149 = pneg %p148
      // Predicated region
      $region25: #{tpu_custom_call.1} parent=5 // pred_check
        _
      $region26: #{tpu_custom_call.1} parent=5 // pred_check_branch
        %151 = sbr.rel (%p148) target = $region28
      $region27: #{tpu_custom_call.1} parent=5 // pred_region
        %s152 = ssub.s32 %s11, 1
        %s153 = sadd.s32 %s20, %s21
        %s154 = smul.u32 16, %s153
        %p155 = scmp.lt.s32.totalorder %s154, 31
        %s156 = scalar_select %p155, %s154, 31
        %s157 = smul.addr %s156, 8
        %s158 = scalar_lea.vmem %s0, %s157
        %p159 = pneg %p51
        %p160 = pneg %p48
        %s161 = sadd.s32 %s20, %s21
        %s162 = smul.u32 16, %s161
        %p163 = scmp.lt.s32.totalorder %s162, 31
        %s164 = scalar_select %p163, %s162, 31
        %s165 = smul.addr %s164, 8
        %s166 = scalar_lea.vmem %s1, %s165
        %p167 = pneg %p79
        %p168 = pneg %p76
        %p169 = pneg %p105
        %p170 = pneg %p102
        %s171 = sand.u32 %s92, 1
        %s172 = scalar_lea.sflag [#allocation3], %s171
        %s173 = sand.u32 %s92, 1
        %s174 = smul.addr %s173, 8
        %s175 = scalar_lea.vmem [#allocation2], %s174
        %s176 = sadd.s32 %s20, %s21
        %s177 = smul.u32 16, %s176
        %p178 = scmp.lt.s32.totalorder %s177, 31
        %s179 = scalar_select %p178, %s177, 31
        %s180 = smul.addr %s179, 8
        %s181 = scalar_lea.vmem %s0, %s180
        %s182 = sadd.s32 %s20, %s21
        %s183 = smul.u32 16, %s182
        %s184 = sadd.s32 %s20, %s21
        %s185 = smul.u32 16, %s184
        %p186 = scmp.lt.s32.totalorder %s185, 31
        %s187 = scalar_select %p186, %s185, 31
        %s188 = smul.addr %s187, 8
        %s189 = scalar_lea.vmem %s1, %s188
        %s190 = sadd.s32 %s20, %s21
        %s191 = smul.u32 16, %s190
        %p192 = scmp.eq.s32.totalorder %s21, 0
        // Predicated region
        $region29: #{tpu_custom_call.1} parent=27 // pred_check
          %p193 = pneg %p192
        $region30: #{tpu_custom_call.1} parent=27 // pred_check_branch
          %195 = sbr.rel (%p193) target = $region32
        $region31: #{tpu_custom_call.1} parent=27 // pred_region
          %196 = vst [vmem:[%s175] sm:$0xff] 0.0
        $region32: #{tpu_custom_call.1} parent=27 // pred_fallthru
          _
        %v197 = vld [vmem:[%s189] sm:$0xff]
        %v198 = vld [vmem:[%s189 + $0x8] sm:$0xff]
        %v199 = vld [vmem:[%s189 + $0x10] sm:$0xff]
        %v200 = vld [vmem:[%s189 + $0x18] sm:$0xff]
        %v201 = vld [vmem:[%s189 + $0x20] sm:$0xff]
        %v202 = vld [vmem:[%s189 + $0x28] sm:$0xff]
        %v203 = vld [vmem:[%s189 + $0x30] sm:$0xff]
        %v204 = vld [vmem:[%s189 + $0x38] sm:$0xff]
        %v205 = vld [vmem:[%s189 + $0x40] sm:$0xff]
        %v206 = vld [vmem:[%s189 + $0x48] sm:$0xff]
        %v207 = vld [vmem:[%s189 + $0x50] sm:$0xff]
        %v208 = vld [vmem:[%s189 + $0x58] sm:$0xff]
        %v209 = vld [vmem:[%s189 + $0x60] sm:$0xff]
        %v210 = vld [vmem:[%s189 + $0x68] sm:$0xff]
        %v211 = vld [vmem:[%s189 + $0x70] sm:$0xff]
        %v212 = vld [vmem:[%s189 + $0x78] sm:$0xff]
        %vm213 = vcmask 130048
        %v214 = vsel %vm213, %v197, -inf
        %215 = vmax.xlane.f32.xlu0 %v214
        %v216 = vpop.xlane.xlu0 %215
        %v217 = vsel %vm213, %v198, -inf
        %218 = vmax.xlane.f32.xlu0 %v217
        %v219 = vpop.xlane.xlu0 %218
        %v220 = vsel %vm213, %v199, -inf
        %221 = vmax.xlane.f32.xlu0 %v220
        %v222 = vpop.xlane.xlu0 %221
        %v223 = vsel %vm213, %v200, -inf
        %224 = vmax.xlane.f32.xlu0 %v223
        %v225 = vpop.xlane.xlu0 %224
        %v226 = vsel %vm213, %v201, -inf
        %227 = vmax.xlane.f32.xlu0 %v226
        %v228 = vpop.xlane.xlu0 %227
        %v229 = vsel %vm213, %v202, -inf
        %230 = vmax.xlane.f32.xlu0 %v229
        %v231 = vpop.xlane.xlu0 %230
        %v232 = vsel %vm213, %v203, -inf
        %233 = vmax.xlane.f32.xlu0 %v232
        %v234 = vpop.xlane.xlu0 %233
        %v235 = vsel %vm213, %v204, -inf
        %236 = vmax.xlane.f32.xlu0 %v235
        %v237 = vpop.xlane.xlu0 %236
        %v238 = vsel %vm213, %v205, -inf
        %239 = vmax.xlane.f32.xlu0 %v238
        %v240 = vpop.xlane.xlu0 %239
        %v241 = vsel %vm213, %v206, -inf
        %242 = vmax.xlane.f32.xlu0 %v241
        %v243 = vpop.xlane.xlu0 %242
        %v244 = vsel %vm213, %v207, -inf
        %245 = vmax.xlane.f32.xlu0 %v244
        %v246 = vpop.xlane.xlu0 %245
        %v247 = vsel %vm213, %v208, -inf
        %248 = vmax.xlane.f32.xlu0 %v247
        %v249 = vpop.xlane.xlu0 %248
        %v250 = vsel %vm213, %v209, -inf
        %251 = vmax.xlane.f32.xlu0 %v250
        %v252 = vpop.xlane.xlu0 %251
        %v253 = vsel %vm213, %v210, -inf
        %254 = vmax.xlane.f32.xlu0 %v253
        %v255 = vpop.xlane.xlu0 %254
        %v256 = vsel %vm213, %v211, -inf
        %257 = vmax.xlane.f32.xlu0 %v256
        %v258 = vpop.xlane.xlu0 %257
        %v259 = vsel %vm213, %v212, -inf
        %260 = vmax.xlane.f32.xlu0 %v259
        %v261 = vpop.xlane.xlu0 %260
        %v262 = vlaneseq
        %v263 = vand.u32 %v262, 127
        %vm264 = vcmp.ge.f32.partialorder %v197, %v216
        %vm265 = vcmp.ge.f32.partialorder %v198, %v219
        %vm266 = vcmp.ge.f32.partialorder %v199, %v222
        %vm267 = vcmp.ge.f32.partialorder %v200, %v225
        %vm268 = vcmp.ge.f32.partialorder %v201, %v228
        %vm269 = vcmp.ge.f32.partialorder %v202, %v231
        %vm270 = vcmp.ge.f32.partialorder %v203, %v234
        %vm271 = vcmp.ge.f32.partialorder %v204, %v237
        %vm272 = vcmp.ge.f32.partialorder %v205, %v240
        %vm273 = vcmp.ge.f32.partialorder %v206, %v243
        %vm274 = vcmp.ge.f32.partialorder %v207, %v246
        %vm275 = vcmp.ge.f32.partialorder %v208, %v249
        %vm276 = vcmp.ge.f32.partialorder %v209, %v252
        %vm277 = vcmp.ge.f32.partialorder %v210, %v255
        %vm278 = vcmp.ge.f32.partialorder %v211, %v258
        %vm279 = vcmp.ge.f32.partialorder %v212, %v261
        %v280 = vsel %vm264, %v263, 16
        %v281 = vsel %vm265, %v263, 16
        %v282 = vsel %vm266, %v263, 16
        %v283 = vsel %vm267, %v263, 16
        %v284 = vsel %vm268, %v263, 16
        %v285 = vsel %vm269, %v263, 16
        %v286 = vsel %vm270, %v263, 16
        %v287 = vsel %vm271, %v263, 16
        %v288 = vsel %vm272, %v263, 16
        %v289 = vsel %vm273, %v263, 16
        %v290 = vsel %vm274, %v263, 16
        %v291 = vsel %vm275, %v263, 16
        %v292 = vsel %vm276, %v263, 16
        %v293 = vsel %vm277, %v263, 16
        %v294 = vsel %vm278, %v263, 16
        %v295 = vsel %vm279, %v263, 16
        %v296 = vsel %vm213, %v280, 2147483647
        %v297 = vand.u32 %v296, 65535
        %v298 = vshra.s32 %v296, 16
        %v299 = vcvt.s32.f32 %v297
        %v300 = vcvt.s32.f32 %v298
        %301 = vmin.xlane.f32.xlu0 %v300
        %v302 = vpop.xlane.xlu0 %301
        %vm303 = vcmp.eq.f32.partialorder %v300, %v302
        %v304 = vsel %vm303, %v299, inf
        %305 = vmin.xlane.f32.xlu0 %v304
        %v306 = vpop.xlane.xlu0 %305
        %v307 = vcvt.f32.s32 %v306
        %v308 = vcvt.f32.s32 %v302
        %v309 = vshll.u32 %v308, 16
        %v310 = vadd.s32 %v309, %v307
        %v311 = vsel %vm213, %v281, 2147483647
        %v312 = vand.u32 %v311, 65535
        %v313 = vshra.s32 %v311, 16
        %v314 = vcvt.s32.f32 %v312
        %v315 = vcvt.s32.f32 %v313
        %316 = vmin.xlane.f32.xlu0 %v315
        %v317 = vpop.xlane.xlu0 %316
        %vm318 = vcmp.eq.f32.partialorder %v315, %v317
        %v319 = vsel %vm318, %v314, inf
        %320 = vmin.xlane.f32.xlu0 %v319
        %v321 = vpop.xlane.xlu0 %320
        %v322 = vcvt.f32.s32 %v321
        %v323 = vcvt.f32.s32 %v317
        %v324 = vshll.u32 %v323, 16
        %v325 = vadd.s32 %v324, %v322
        %v326 = vsel %vm213, %v282, 2147483647
        %v327 = vand.u32 %v326, 65535
        %v328 = vshra.s32 %v326, 16
        %v329 = vcvt.s32.f32 %v327
        %v330 = vcvt.s32.f32 %v328
        %331 = vmin.xlane.f32.xlu0 %v330
        %v332 = vpop.xlane.xlu0 %331
        %vm333 = vcmp.eq.f32.partialorder %v330, %v332
        %v334 = vsel %vm333, %v329, inf
        %335 = vmin.xlane.f32.xlu0 %v334
        %v336 = vpop.xlane.xlu0 %335
        %v337 = vcvt.f32.s32 %v336
        %v338 = vcvt.f32.s32 %v332
        %v339 = vshll.u32 %v338, 16
        %v340 = vadd.s32 %v339, %v337
        %v341 = vsel %vm213, %v283, 2147483647
        %v342 = vand.u32 %v341, 65535
        %v343 = vshra.s32 %v341, 16
        %v344 = vcvt.s32.f32 %v342
        %v345 = vcvt.s32.f32 %v343
        %346 = vmin.xlane.f32.xlu0 %v345
        %v347 = vpop.xlane.xlu0 %346
        %vm348 = vcmp.eq.f32.partialorder %v345, %v347
        %v349 = vsel %vm348, %v344, inf
        %350 = vmin.xlane.f32.xlu0 %v349
        %v351 = vpop.xlane.xlu0 %350
        %v352 = vcvt.f32.s32 %v351
        %v353 = vcvt.f32.s32 %v347
        %v354 = vshll.u32 %v353, 16
        %v355 = vadd.s32 %v354, %v352
        %v356 = vsel %vm213, %v284, 2147483647
        %v357 = vand.u32 %v356, 65535
        %v358 = vshra.s32 %v356, 16
        %v359 = vcvt.s32.f32 %v357
        %v360 = vcvt.s32.f32 %v358
        %361 = vmin.xlane.f32.xlu0 %v360
        %v362 = vpop.xlane.xlu0 %361
        %vm363 = vcmp.eq.f32.partialorder %v360, %v362
        %v364 = vsel %vm363, %v359, inf
        %365 = vmin.xlane.f32.xlu0 %v364
        %v366 = vpop.xlane.xlu0 %365
        %v367 = vcvt.f32.s32 %v366
        %v368 = vcvt.f32.s32 %v362
        %v369 = vshll.u32 %v368, 16
        %v370 = vadd.s32 %v369, %v367
        %v371 = vsel %vm213, %v285, 2147483647
        %v372 = vand.u32 %v371, 65535
        %v373 = vshra.s32 %v371, 16
        %v374 = vcvt.s32.f32 %v372
        %v375 = vcvt.s32.f32 %v373
        %376 = vmin.xlane.f32.xlu0 %v375
        %v377 = vpop.xlane.xlu0 %376
        %vm378 = vcmp.eq.f32.partialorder %v375, %v377
        %v379 = vsel %vm378, %v374, inf
        %380 = vmin.xlane.f32.xlu0 %v379
        %v381 = vpop.xlane.xlu0 %380
        %v382 = vcvt.f32.s32 %v381
        %v383 = vcvt.f32.s32 %v377
        %v384 = vshll.u32 %v383, 16
        %v385 = vadd.s32 %v384, %v382
        %v386 = vsel %vm213, %v286, 2147483647
        %v387 = vand.u32 %v386, 65535
        %v388 = vshra.s32 %v386, 16
        %v389 = vcvt.s32.f32 %v387
        %v390 = vcvt.s32.f32 %v388
        %391 = vmin.xlane.f32.xlu0 %v390
        %v392 = vpop.xlane.xlu0 %391
        %vm393 = vcmp.eq.f32.partialorder %v390, %v392
        %v394 = vsel %vm393, %v389, inf
        %395 = vmin.xlane.f32.xlu0 %v394
        %v396 = vpop.xlane.xlu0 %395
        %v397 = vcvt.f32.s32 %v396
        %v398 = vcvt.f32.s32 %v392
        %v399 = vshll.u32 %v398, 16
        %v400 = vadd.s32 %v399, %v397
        %v401 = vsel %vm213, %v287, 2147483647
        %v402 = vand.u32 %v401, 65535
        %v403 = vshra.s32 %v401, 16
        %v404 = vcvt.s32.f32 %v402
        %v405 = vcvt.s32.f32 %v403
        %406 = vmin.xlane.f32.xlu0 %v405
        %v407 = vpop.xlane.xlu0 %406
        %vm408 = vcmp.eq.f32.partialorder %v405, %v407
        %v409 = vsel %vm408, %v404, inf
        %410 = vmin.xlane.f32.xlu0 %v409
        %v411 = vpop.xlane.xlu0 %410
        %v412 = vcvt.f32.s32 %v411
        %v413 = vcvt.f32.s32 %v407
        %v414 = vshll.u32 %v413, 16
        %v415 = vadd.s32 %v414, %v412
        %v416 = vsel %vm213, %v288, 2147483647
        %v417 = vand.u32 %v416, 65535
        %v418 = vshra.s32 %v416, 16
        %v419 = vcvt.s32.f32 %v417
        %v420 = vcvt.s32.f32 %v418
        %421 = vmin.xlane.f32.xlu0 %v420
        %v422 = vpop.xlane.xlu0 %421
        %vm423 = vcmp.eq.f32.partialorder %v420, %v422
        %v424 = vsel %vm423, %v419, inf
        %425 = vmin.xlane.f32.xlu0 %v424
        %v426 = vpop.xlane.xlu0 %425
        %v427 = vcvt.f32.s32 %v426
        %v428 = vcvt.f32.s32 %v422
        %v429 = vshll.u32 %v428, 16
        %v430 = vadd.s32 %v429, %v427
        %v431 = vsel %vm213, %v289, 2147483647
        %v432 = vand.u32 %v431, 65535
        %v433 = vshra.s32 %v431, 16
        %v434 = vcvt.s32.f32 %v432
        %v435 = vcvt.s32.f32 %v433
        %436 = vmin.xlane.f32.xlu0 %v435
        %v437 = vpop.xlane.xlu0 %436
        %vm438 = vcmp.eq.f32.partialorder %v435, %v437
        %v439 = vsel %vm438, %v434, inf
        %440 = vmin.xlane.f32.xlu0 %v439
        %v441 = vpop.xlane.xlu0 %440
        %v442 = vcvt.f32.s32 %v441
        %v443 = vcvt.f32.s32 %v437
        %v444 = vshll.u32 %v443, 16
        %v445 = vadd.s32 %v444, %v442
        %v446 = vsel %vm213, %v290, 2147483647
        %v447 = vand.u32 %v446, 65535
        %v448 = vshra.s32 %v446, 16
        %v449 = vcvt.s32.f32 %v447
        %v450 = vcvt.s32.f32 %v448
        %451 = vmin.xlane.f32.xlu0 %v450
        %v452 = vpop.xlane.xlu0 %451
        %vm453 = vcmp.eq.f32.partialorder %v450, %v452
        %v454 = vsel %vm453, %v449, inf
        %455 = vmin.xlane.f32.xlu0 %v454
        %v456 = vpop.xlane.xlu0 %455
        %v457 = vcvt.f32.s32 %v456
        %v458 = vcvt.f32.s32 %v452
        %v459 = vshll.u32 %v458, 16
        %v460 = vadd.s32 %v459, %v457
        %v461 = vsel %vm213, %v291, 2147483647
        %v462 = vand.u32 %v461, 65535
        %v463 = vshra.s32 %v461, 16
        %v464 = vcvt.s32.f32 %v462
        %v465 = vcvt.s32.f32 %v463
        %466 = vmin.xlane.f32.xlu0 %v465
        %v467 = vpop.xlane.xlu0 %466
        %vm468 = vcmp.eq.f32.partialorder %v465, %v467
        %v469 = vsel %vm468, %v464, inf
        %470 = vmin.xlane.f32.xlu0 %v469
        %v471 = vpop.xlane.xlu0 %470
        %v472 = vcvt.f32.s32 %v471
        %v473 = vcvt.f32.s32 %v467
        %v474 = vshll.u32 %v473, 16
        %v475 = vadd.s32 %v474, %v472
        %v476 = vsel %vm213, %v292, 2147483647
        %v477 = vand.u32 %v476, 65535
        %v478 = vshra.s32 %v476, 16
        %v479 = vcvt.s32.f32 %v477
        %v480 = vcvt.s32.f32 %v478
        %481 = vmin.xlane.f32.xlu0 %v480
        %v482 = vpop.xlane.xlu0 %481
        %vm483 = vcmp.eq.f32.partialorder %v480, %v482
        %v484 = vsel %vm483, %v479, inf
        %485 = vmin.xlane.f32.xlu0 %v484
        %v486 = vpop.xlane.xlu0 %485
        %v487 = vcvt.f32.s32 %v486
        %v488 = vcvt.f32.s32 %v482
        %v489 = vshll.u32 %v488, 16
        %v490 = vadd.s32 %v489, %v487
        %v491 = vsel %vm213, %v293, 2147483647
        %v492 = vand.u32 %v491, 65535
        %v493 = vshra.s32 %v491, 16
        %v494 = vcvt.s32.f32 %v492
        %v495 = vcvt.s32.f32 %v493
        %496 = vmin.xlane.f32.xlu0 %v495
        %v497 = vpop.xlane.xlu0 %496
        %vm498 = vcmp.eq.f32.partialorder %v495, %v497
        %v499 = vsel %vm498, %v494, inf
        %500 = vmin.xlane.f32.xlu0 %v499
        %v501 = vpop.xlane.xlu0 %500
        %v502 = vcvt.f32.s32 %v501
        %v503 = vcvt.f32.s32 %v497
        %v504 = vshll.u32 %v503, 16
        %v505 = vadd.s32 %v504, %v502
        %v506 = vsel %vm213, %v294, 2147483647
        %v507 = vand.u32 %v506, 65535
        %v508 = vshra.s32 %v506, 16
        %v509 = vcvt.s32.f32 %v507
        %v510 = vcvt.s32.f32 %v508
        %511 = vmin.xlane.f32.xlu0 %v510
        %v512 = vpop.xlane.xlu0 %511
        %vm513 = vcmp.eq.f32.partialorder %v510, %v512
        %v514 = vsel %vm513, %v509, inf
        %515 = vmin.xlane.f32.xlu0 %v514
        %v516 = vpop.xlane.xlu0 %515
        %v517 = vcvt.f32.s32 %v516
        %v518 = vcvt.f32.s32 %v512
        %v519 = vshll.u32 %v518, 16
        %v520 = vadd.s32 %v519, %v517
        %v521 = vsel %vm213, %v295, 2147483647
        %v522 = vand.u32 %v521, 65535
        %v523 = vshra.s32 %v521, 16
        %v524 = vcvt.s32.f32 %v522
        %v525 = vcvt.s32.f32 %v523
        %526 = vmin.xlane.f32.xlu0 %v525
        %v527 = vpop.xlane.xlu0 %526
        %vm528 = vcmp.eq.f32.partialorder %v525, %v527
        %v529 = vsel %vm528, %v524, inf
        %530 = vmin.xlane.f32.xlu0 %v529
        %v531 = vpop.xlane.xlu0 %530
        %v532 = vcvt.f32.s32 %v531
        %v533 = vcvt.f32.s32 %v527
        %v534 = vshll.u32 %v533, 16
        %v535 = vadd.s32 %v534, %v532
        %v536 = vsub.f32 %v197, %v216
        %v537 = vsub.f32 %v198, %v219
        %v538 = vsub.f32 %v199, %v222
        %v539 = vsub.f32 %v200, %v225
        %v540 = vsub.f32 %v201, %v228
        %v541 = vsub.f32 %v202, %v231
        %v542 = vsub.f32 %v203, %v234
        %v543 = vsub.f32 %v204, %v237
        %v544 = vsub.f32 %v205, %v240
        %v545 = vsub.f32 %v206, %v243
        %v546 = vsub.f32 %v207, %v246
        %v547 = vsub.f32 %v208, %v249
        %v548 = vsub.f32 %v209, %v252
        %v549 = vsub.f32 %v210, %v255
        %v550 = vsub.f32 %v211, %v258
        %v551 = vsub.f32 %v212, %v261
        %v552 = vmul.f32 %v536, 1.442695
        %v553 = vpow.pop %v552
        %v554 = vmul.f32 %v537, 1.442695
        %v555 = vpow.pop %v554
        %v556 = vmul.f32 %v538, 1.442695
        %v557 = vpow.pop %v556
        %v558 = vmul.f32 %v539, 1.442695
        %v559 = vpow.pop %v558
        %v560 = vmul.f32 %v540, 1.442695
        %v561 = vpow.pop %v560
        %v562 = vmul.f32 %v541, 1.442695
        %v563 = vpow.pop %v562
        %v564 = vmul.f32 %v542, 1.442695
        %v565 = vpow.pop %v564
        %v566 = vmul.f32 %v543, 1.442695
        %v567 = vpow.pop %v566
        %v568 = vmul.f32 %v544, 1.442695
        %v569 = vpow.pop %v568
        %v570 = vmul.f32 %v545, 1.442695
        %v571 = vpow.pop %v570
        %v572 = vmul.f32 %v546, 1.442695
        %v573 = vpow.pop %v572
        %v574 = vmul.f32 %v547, 1.442695
        %v575 = vpow.pop %v574
        %v576 = vmul.f32 %v548, 1.442695
        %v577 = vpow.pop %v576
        %v578 = vmul.f32 %v549, 1.442695
        %v579 = vpow.pop %v578
        %v580 = vmul.f32 %v550, 1.442695
        %v581 = vpow.pop %v580
        %v582 = vmul.f32 %v551, 1.442695
        %v583 = vpow.pop %v582
        %v584 = vsel %vm213, %v553, 0.0
        %585 = vadd.xlane.f32.xlu0 %v584
        %v586 = vpop.xlane.xlu0 %585
        %v587 = vsel %vm213, %v555, 0.0
        %588 = vadd.xlane.f32.xlu0 %v587
        %v589 = vpop.xlane.xlu0 %588
        %v590 = vsel %vm213, %v557, 0.0
        %591 = vadd.xlane.f32.xlu0 %v590
        %v592 = vpop.xlane.xlu0 %591
        %v593 = vsel %vm213, %v559, 0.0
        %594 = vadd.xlane.f32.xlu0 %v593
        %v595 = vpop.xlane.xlu0 %594
        %v596 = vsel %vm213, %v561, 0.0
        %597 = vadd.xlane.f32.xlu0 %v596
        %v598 = vpop.xlane.xlu0 %597
        %v599 = vsel %vm213, %v563, 0.0
        %600 = vadd.xlane.f32.xlu0 %v599
        %v601 = vpop.xlane.xlu0 %600
        %v602 = vsel %vm213, %v565, 0.0
        %603 = vadd.xlane.f32.xlu0 %v602
        %v604 = vpop.xlane.xlu0 %603
        %v605 = vsel %vm213, %v567, 0.0
        %606 = vadd.xlane.f32.xlu0 %v605
        %v607 = vpop.xlane.xlu0 %606
        %v608 = vsel %vm213, %v569, 0.0
        %609 = vadd.xlane.f32.xlu0 %v608
        %v610 = vpop.xlane.xlu0 %609
        %v611 = vsel %vm213, %v571, 0.0
        %612 = vadd.xlane.f32.xlu0 %v611
        %v613 = vpop.xlane.xlu0 %612
        %v614 = vsel %vm213, %v573, 0.0
        %615 = vadd.xlane.f32.xlu0 %v614
        %v616 = vpop.xlane.xlu0 %615
        %v617 = vsel %vm213, %v575, 0.0
        %618 = vadd.xlane.f32.xlu0 %v617
        %v619 = vpop.xlane.xlu0 %618
        %v620 = vsel %vm213, %v577, 0.0
        %621 = vadd.xlane.f32.xlu0 %v620
        %v622 = vpop.xlane.xlu0 %621
        %v623 = vsel %vm213, %v579, 0.0
        %624 = vadd.xlane.f32.xlu0 %v623
        %v625 = vpop.xlane.xlu0 %624
        %v626 = vsel %vm213, %v581, 0.0
        %627 = vadd.xlane.f32.xlu0 %v626
        %v628 = vpop.xlane.xlu0 %627
        %v629 = vsel %vm213, %v583, 0.0
        %630 = vadd.xlane.f32.xlu0 %v629
        %v631 = vpop.xlane.xlu0 %630
        %v632 = vrcp.pop %v586
        %v633 = vmul.f32 %v586, %v632
        %v634 = vsub.f32 1.0, %v633
        %v635 = vmul.f32 %v632, %v634
        %v636 = vadd.f32 %v632, %v635
        %vm637 = vweird.f32 %v586
        %vm638 = vweird.f32 %v632
        %vm639 = vmor %vm637, %vm638
        %v640 = vsel %vm639, %v632, %v636
        %v641 = vand.u32 2147483647, %v586
        %vm642 = vcmp.eq.f32.partialorder %v641, 8.507059e+37
        %v643 = vand.u32 %v586, 2147483648
        %v644 = vor.u32 1.1754944e-38, %v643
        %v645 = vsel %vm642, %v644, %v640
        %v646 = vrcp.pop %v589
        %v647 = vmul.f32 %v589, %v646
        %v648 = vsub.f32 1.0, %v647
        %v649 = vmul.f32 %v646, %v648
        %v650 = vadd.f32 %v646, %v649
        %vm651 = vweird.f32 %v589
        %vm652 = vweird.f32 %v646
        %vm653 = vmor %vm651, %vm652
        %v654 = vsel %vm653, %v646, %v650
        %v655 = vand.u32 2147483647, %v589
        %vm656 = vcmp.eq.f32.partialorder %v655, 8.507059e+37
        %v657 = vand.u32 %v589, 2147483648
        %v658 = vor.u32 1.1754944e-38, %v657
        %v659 = vsel %vm656, %v658, %v654
        %v660 = vrcp.pop %v592
        %v661 = vmul.f32 %v592, %v660
        %v662 = vsub.f32 1.0, %v661
        %v663 = vmul.f32 %v660, %v662
        %v664 = vadd.f32 %v660, %v663
        %vm665 = vweird.f32 %v592
        %vm666 = vweird.f32 %v660
        %vm667 = vmor %vm665, %vm666
        %v668 = vsel %vm667, %v660, %v664
        %v669 = vand.u32 2147483647, %v592
        %vm670 = vcmp.eq.f32.partialorder %v669, 8.507059e+37
        %v671 = vand.u32 %v592, 2147483648
        %v672 = vor.u32 1.1754944e-38, %v671
        %v673 = vsel %vm670, %v672, %v668
        %v674 = vrcp.pop %v595
        %v675 = vmul.f32 %v595, %v674
        %v676 = vsub.f32 1.0, %v675
        %v677 = vmul.f32 %v674, %v676
        %v678 = vadd.f32 %v674, %v677
        %vm679 = vweird.f32 %v595
        %vm680 = vweird.f32 %v674
        %vm681 = vmor %vm679, %vm680
        %v682 = vsel %vm681, %v674, %v678
        %v683 = vand.u32 2147483647, %v595
        %vm684 = vcmp.eq.f32.partialorder %v683, 8.507059e+37
        %v685 = vand.u32 %v595, 2147483648
        %v686 = vor.u32 1.1754944e-38, %v685
        %v687 = vsel %vm684, %v686, %v682
        %v688 = vrcp.pop %v598
        %v689 = vmul.f32 %v598, %v688
        %v690 = vsub.f32 1.0, %v689
        %v691 = vmul.f32 %v688, %v690
        %v692 = vadd.f32 %v688, %v691
        %vm693 = vweird.f32 %v598
        %vm694 = vweird.f32 %v688
        %vm695 = vmor %vm693, %vm694
        %v696 = vsel %vm695, %v688, %v692
        %v697 = vand.u32 2147483647, %v598
        %vm698 = vcmp.eq.f32.partialorder %v697, 8.507059e+37
        %v699 = vand.u32 %v598, 2147483648
        %v700 = vor.u32 1.1754944e-38, %v699
        %v701 = vsel %vm698, %v700, %v696
        %v702 = vrcp.pop %v601
        %v703 = vmul.f32 %v601, %v702
        %v704 = vsub.f32 1.0, %v703
        %v705 = vmul.f32 %v702, %v704
        %v706 = vadd.f32 %v702, %v705
        %vm707 = vweird.f32 %v601
        %vm708 = vweird.f32 %v702
        %vm709 = vmor %vm707, %vm708
        %v710 = vsel %vm709, %v702, %v706
        %v711 = vand.u32 2147483647, %v601
        %vm712 = vcmp.eq.f32.partialorder %v711, 8.507059e+37
        %v713 = vand.u32 %v601, 2147483648
        %v714 = vor.u32 1.1754944e-38, %v713
        %v715 = vsel %vm712, %v714, %v710
        %v716 = vrcp.pop %v604
        %v717 = vmul.f32 %v604, %v716
        %v718 = vsub.f32 1.0, %v717
        %v719 = vmul.f32 %v716, %v718
        %v720 = vadd.f32 %v716, %v719
        %vm721 = vweird.f32 %v604
        %vm722 = vweird.f32 %v716
        %vm723 = vmor %vm721, %vm722
        %v724 = vsel %vm723, %v716, %v720
        %v725 = vand.u32 2147483647, %v604
        %vm726 = vcmp.eq.f32.partialorder %v725, 8.507059e+37
        %v727 = vand.u32 %v604, 2147483648
        %v728 = vor.u32 1.1754944e-38, %v727
        %v729 = vsel %vm726, %v728, %v724
        %v730 = vrcp.pop %v607
        %v731 = vmul.f32 %v607, %v730
        %v732 = vsub.f32 1.0, %v731
        %v733 = vmul.f32 %v730, %v732
        %v734 = vadd.f32 %v730, %v733
        %vm735 = vweird.f32 %v607
        %vm736 = vweird.f32 %v730
        %vm737 = vmor %vm735, %vm736
        %v738 = vsel %vm737, %v730, %v734
        %v739 = vand.u32 2147483647, %v607
        %vm740 = vcmp.eq.f32.partialorder %v739, 8.507059e+37
        %v741 = vand.u32 %v607, 2147483648
        %v742 = vor.u32 1.1754944e-38, %v741
        %v743 = vsel %vm740, %v742, %v738
        %v744 = vrcp.pop %v610
        %v745 = vmul.f32 %v610, %v744
        %v746 = vsub.f32 1.0, %v745
        %v747 = vmul.f32 %v744, %v746
        %v748 = vadd.f32 %v744, %v747
        %vm749 = vweird.f32 %v610
        %vm750 = vweird.f32 %v744
        %vm751 = vmor %vm749, %vm750
        %v752 = vsel %vm751, %v744, %v748
        %v753 = vand.u32 2147483647, %v610
        %vm754 = vcmp.eq.f32.partialorder %v753, 8.507059e+37
        %v755 = vand.u32 %v610, 2147483648
        %v756 = vor.u32 1.1754944e-38, %v755
        %v757 = vsel %vm754, %v756, %v752
        %v758 = vrcp.pop %v613
        %v759 = vmul.f32 %v613, %v758
        %v760 = vsub.f32 1.0, %v759
        %v761 = vmul.f32 %v758, %v760
        %v762 = vadd.f32 %v758, %v761
        %vm763 = vweird.f32 %v613
        %vm764 = vweird.f32 %v758
        %vm765 = vmor %vm763, %vm764
        %v766 = vsel %vm765, %v758, %v762
        %v767 = vand.u32 2147483647, %v613
        %vm768 = vcmp.eq.f32.partialorder %v767, 8.507059e+37
        %v769 = vand.u32 %v613, 2147483648
        %v770 = vor.u32 1.1754944e-38, %v769
        %v771 = vsel %vm768, %v770, %v766
        %v772 = vrcp.pop %v616
        %v773 = vmul.f32 %v616, %v772
        %v774 = vsub.f32 1.0, %v773
        %v775 = vmul.f32 %v772, %v774
        %v776 = vadd.f32 %v772, %v775
        %vm777 = vweird.f32 %v616
        %vm778 = vweird.f32 %v772
        %vm779 = vmor %vm777, %vm778
        %v780 = vsel %vm779, %v772, %v776
        %v781 = vand.u32 2147483647, %v616
        %vm782 = vcmp.eq.f32.partialorder %v781, 8.507059e+37
        %v783 = vand.u32 %v616, 2147483648
        %v784 = vor.u32 1.1754944e-38, %v783
        %v785 = vsel %vm782, %v784, %v780
        %v786 = vrcp.pop %v619
        %v787 = vmul.f32 %v619, %v786
        %v788 = vsub.f32 1.0, %v787
        %v789 = vmul.f32 %v786, %v788
        %v790 = vadd.f32 %v786, %v789
        %vm791 = vweird.f32 %v619
        %vm792 = vweird.f32 %v786
        %vm793 = vmor %vm791, %vm792
        %v794 = vsel %vm793, %v786, %v790
        %v795 = vand.u32 2147483647, %v619
        %vm796 = vcmp.eq.f32.partialorder %v795, 8.507059e+37
        %v797 = vand.u32 %v619, 2147483648
        %v798 = vor.u32 1.1754944e-38, %v797
        %v799 = vsel %vm796, %v798, %v794
        %v800 = vrcp.pop %v622
        %v801 = vmul.f32 %v622, %v800
        %v802 = vsub.f32 1.0, %v801
        %v803 = vmul.f32 %v800, %v802
        %v804 = vadd.f32 %v800, %v803
        %vm805 = vweird.f32 %v622
        %vm806 = vweird.f32 %v800
        %vm807 = vmor %vm805, %vm806
        %v808 = vsel %vm807, %v800, %v804
        %v809 = vand.u32 2147483647, %v622
        %vm810 = vcmp.eq.f32.partialorder %v809, 8.507059e+37
        %v811 = vand.u32 %v622, 2147483648
        %v812 = vor.u32 1.1754944e-38, %v811
        %v813 = vsel %vm810, %v812, %v808
        %v814 = vrcp.pop %v625
        %v815 = vmul.f32 %v625, %v814
        %v816 = vsub.f32 1.0, %v815
        %v817 = vmul.f32 %v814, %v816
        %v818 = vadd.f32 %v814, %v817
        %vm819 = vweird.f32 %v625
        %vm820 = vweird.f32 %v814
        %vm821 = vmor %vm819, %vm820
        %v822 = vsel %vm821, %v814, %v818
        %v823 = vand.u32 2147483647, %v625
        %vm824 = vcmp.eq.f32.partialorder %v823, 8.507059e+37
        %v825 = vand.u32 %v625, 2147483648
        %v826 = vor.u32 1.1754944e-38, %v825
        %v827 = vsel %vm824, %v826, %v822
        %v828 = vrcp.pop %v628
        %v829 = vmul.f32 %v628, %v828
        %v830 = vsub.f32 1.0, %v829
        %v831 = vmul.f32 %v828, %v830
        %v832 = vadd.f32 %v828, %v831
        %vm833 = vweird.f32 %v628
        %vm834 = vweird.f32 %v828
        %vm835 = vmor %vm833, %vm834
        %v836 = vsel %vm835, %v828, %v832
        %v837 = vand.u32 2147483647, %v628
        %vm838 = vcmp.eq.f32.partialorder %v837, 8.507059e+37
        %v839 = vand.u32 %v628, 2147483648
        %v840 = vor.u32 1.1754944e-38, %v839
        %v841 = vsel %vm838, %v840, %v836
        %v842 = vrcp.pop %v631
        %v843 = vmul.f32 %v631, %v842
        %v844 = vsub.f32 1.0, %v843
        %v845 = vmul.f32 %v842, %v844
        %v846 = vadd.f32 %v842, %v845
        %vm847 = vweird.f32 %v631
        %vm848 = vweird.f32 %v842
        %vm849 = vmor %vm847, %vm848
        %v850 = vsel %vm849, %v842, %v846
        %v851 = vand.u32 2147483647, %v631
        %vm852 = vcmp.eq.f32.partialorder %v851, 8.507059e+37
        %v853 = vand.u32 %v631, 2147483648
        %v854 = vor.u32 1.1754944e-38, %v853
        %v855 = vsel %vm852, %v854, %v850
        %v856 = vld [vmem:[%s181] sm:$0xff]
        %v857 = vld [vmem:[%s181 + $0x8] sm:$0xff]
        %v858 = vld [vmem:[%s181 + $0x10] sm:$0xff]
        %v859 = vld [vmem:[%s181 + $0x18] sm:$0xff]
        %v860 = vld [vmem:[%s181 + $0x20] sm:$0xff]
        %v861 = vld [vmem:[%s181 + $0x28] sm:$0xff]
        %v862 = vld [vmem:[%s181 + $0x30] sm:$0xff]
        %v863 = vld [vmem:[%s181 + $0x38] sm:$0xff]
        %v864 = vld [vmem:[%s181 + $0x40] sm:$0xff]
        %v865 = vld [vmem:[%s181 + $0x48] sm:$0xff]
        %v866 = vld [vmem:[%s181 + $0x50] sm:$0xff]
        %v867 = vld [vmem:[%s181 + $0x58] sm:$0xff]
        %v868 = vld [vmem:[%s181 + $0x60] sm:$0xff]
        %v869 = vld [vmem:[%s181 + $0x68] sm:$0xff]
        %v870 = vld [vmem:[%s181 + $0x70] sm:$0xff]
        %v871 = vld [vmem:[%s181 + $0x78] sm:$0xff]
        %vm872 = vcmp.eq.s32.totalorder %v310, %v856
        %vm873 = vcmp.eq.s32.totalorder %v325, %v857
        %vm874 = vcmp.eq.s32.totalorder %v340, %v858
        %vm875 = vcmp.eq.s32.totalorder %v355, %v859
        %vm876 = vcmp.eq.s32.totalorder %v370, %v860
        %vm877 = vcmp.eq.s32.totalorder %v385, %v861
        %vm878 = vcmp.eq.s32.totalorder %v400, %v862
        %vm879 = vcmp.eq.s32.totalorder %v415, %v863
        %vm880 = vcmp.eq.s32.totalorder %v430, %v864
        %vm881 = vcmp.eq.s32.totalorder %v445, %v865
        %vm882 = vcmp.eq.s32.totalorder %v460, %v866
        %vm883 = vcmp.eq.s32.totalorder %v475, %v867
        %vm884 = vcmp.eq.s32.totalorder %v490, %v868
        %vm885 = vcmp.eq.s32.totalorder %v505, %v869
        %vm886 = vcmp.eq.s32.totalorder %v520, %v870
        %vm887 = vcmp.eq.s32.totalorder %v535, %v871
        %v888 = vsel %vm872, 1, 0
        %v889 = vsel %vm873, 1, 0
        %v890 = vsel %vm874, 1, 0
        %v891 = vsel %vm875, 1, 0
        %v892 = vsel %vm876, 1, 0
        %v893 = vsel %vm877, 1, 0
        %v894 = vsel %vm878, 1, 0
        %v895 = vsel %vm879, 1, 0
        %v896 = vsel %vm880, 1, 0
        %v897 = vsel %vm881, 1, 0
        %v898 = vsel %vm882, 1, 0
        %v899 = vsel %vm883, 1, 0
        %v900 = vsel %vm884, 1, 0
        %v901 = vsel %vm885, 1, 0
        %v902 = vsel %vm886, 1, 0
        %v903 = vsel %vm887, 1, 0
        %v904 = vcvt.s32.f32 %v888
        %v905 = vcvt.s32.f32 %v889
        %v906 = vcvt.s32.f32 %v890
        %v907 = vcvt.s32.f32 %v891
        %v908 = vcvt.s32.f32 %v892
        %v909 = vcvt.s32.f32 %v893
        %v910 = vcvt.s32.f32 %v894
        %v911 = vcvt.s32.f32 %v895
        %v912 = vcvt.s32.f32 %v896
        %v913 = vcvt.s32.f32 %v897
        %v914 = vcvt.s32.f32 %v898
        %v915 = vcvt.s32.f32 %v899
        %v916 = vcvt.s32.f32 %v900
        %v917 = vcvt.s32.f32 %v901
        %v918 = vcvt.s32.f32 %v902
        %v919 = vcvt.s32.f32 %v903
        %s920 = sadd.s32 %s20, %s21
        %s921 = smul.u32 %s920, 128
        %v922 = vlaneseq
        %v923 = vshrl.u32 %v922, 7
        %v924 = vadd.s32 %v923, 8
        %v925 = vadd.s32 %v923, 16
        %v926 = vadd.s32 %v923, 24
        %v927 = vadd.s32 %v923, 32
        %v928 = vadd.s32 %v923, 40
        %v929 = vadd.s32 %v923, 48
        %v930 = vadd.s32 %v923, 56
        %v931 = vadd.s32 %v923, 64
        %v932 = vadd.s32 %v923, 72
        %v933 = vadd.s32 %v923, 80
        %v934 = vadd.s32 %v923, 88
        %v935 = vadd.s32 %v923, 96
        %v936 = vadd.s32 %v923, 104
        %v937 = vadd.s32 %v923, 112
        %v938 = vadd.s32 %v923, 120
        %v939 = vstv %s921
        %v940 = vadd.s32 %v939, %v923
        %v941 = vadd.s32 %v939, %v924
        %v942 = vadd.s32 %v939, %v925
        %v943 = vadd.s32 %v939, %v926
        %v944 = vadd.s32 %v939, %v927
        %v945 = vadd.s32 %v939, %v928
        %v946 = vadd.s32 %v939, %v929
        %v947 = vadd.s32 %v939, %v930
        %v948 = vadd.s32 %v939, %v931
        %v949 = vadd.s32 %v939, %v932
        %v950 = vadd.s32 %v939, %v933
        %v951 = vadd.s32 %v939, %v934
        %v952 = vadd.s32 %v939, %v935
        %v953 = vadd.s32 %v939, %v936
        %v954 = vadd.s32 %v939, %v937
        %v955 = vadd.s32 %v939, %v938
        %vm956 = vcmp.lt.s32.totalorder %v940, 64
        %vm957 = vcmp.lt.s32.totalorder %v941, 64
        %vm958 = vcmp.lt.s32.totalorder %v942, 64
        %vm959 = vcmp.lt.s32.totalorder %v943, 64
        %vm960 = vcmp.lt.s32.totalorder %v944, 64
        %vm961 = vcmp.lt.s32.totalorder %v945, 64
        %vm962 = vcmp.lt.s32.totalorder %v946, 64
        %vm963 = vcmp.lt.s32.totalorder %v947, 64
        %vm964 = vcmp.lt.s32.totalorder %v948, 64
        %vm965 = vcmp.lt.s32.totalorder %v949, 64
        %vm966 = vcmp.lt.s32.totalorder %v950, 64
        %vm967 = vcmp.lt.s32.totalorder %v951, 64
        %vm968 = vcmp.lt.s32.totalorder %v952, 64
        %vm969 = vcmp.lt.s32.totalorder %v953, 64
        %vm970 = vcmp.lt.s32.totalorder %v954, 64
        %vm971 = vcmp.lt.s32.totalorder %v955, 64
        %v972 = vsel %vm956, 1, 0
        %v973 = vsel %vm957, 1, 0
        %v974 = vsel %vm958, 1, 0
        %v975 = vsel %vm959, 1, 0
        %v976 = vsel %vm960, 1, 0
        %v977 = vsel %vm961, 1, 0
        %v978 = vsel %vm962, 1, 0
        %v979 = vsel %vm963, 1, 0
        %v980 = vsel %vm964, 1, 0
        %v981 = vsel %vm965, 1, 0
        %v982 = vsel %vm966, 1, 0
        %v983 = vsel %vm967, 1, 0
        %v984 = vsel %vm968, 1, 0
        %v985 = vsel %vm969, 1, 0
        %v986 = vsel %vm970, 1, 0
        %v987 = vsel %vm971, 1, 0
        %v988 = vcvt.s32.f32 %v972
        %v989 = vcvt.s32.f32 %v973
        %v990 = vcvt.s32.f32 %v974
        %v991 = vcvt.s32.f32 %v975
        %v992 = vcvt.s32.f32 %v976
        %v993 = vcvt.s32.f32 %v977
        %v994 = vcvt.s32.f32 %v978
        %v995 = vcvt.s32.f32 %v979
        %v996 = vcvt.s32.f32 %v980
        %v997 = vcvt.s32.f32 %v981
        %v998 = vcvt.s32.f32 %v982
        %v999 = vcvt.s32.f32 %v983
        %v1000 = vcvt.s32.f32 %v984
        %v1001 = vcvt.s32.f32 %v985
        %v1002 = vcvt.s32.f32 %v986
        %v1003 = vcvt.s32.f32 %v987
        %v1004 = vmul.f32 %v645, 15.0
        %v1005 = vmul.f32 %v659, 15.0
        %v1006 = vmul.f32 %v673, 15.0
        %v1007 = vmul.f32 %v687, 15.0
        %v1008 = vmul.f32 %v701, 15.0
        %v1009 = vmul.f32 %v715, 15.0
        %v1010 = vmul.f32 %v729, 15.0
        %v1011 = vmul.f32 %v743, 15.0
        %v1012 = vmul.f32 %v757, 15.0
        %v1013 = vmul.f32 %v771, 15.0
        %v1014 = vmul.f32 %v785, 15.0
        %v1015 = vmul.f32 %v799, 15.0
        %v1016 = vmul.f32 %v813, 15.0
        %v1017 = vmul.f32 %v827, 15.0
        %v1018 = vmul.f32 %v841, 15.0
        %v1019 = vmul.f32 %v855, 15.0
        %v1020 = vceil.f32 %v1004
        %v1021 = vceil.f32 %v1005
        %v1022 = vceil.f32 %v1006
        %v1023 = vceil.f32 %v1007
        %v1024 = vceil.f32 %v1008
        %v1025 = vceil.f32 %v1009
        %v1026 = vceil.f32 %v1010
        %v1027 = vceil.f32 %v1011
        %v1028 = vceil.f32 %v1012
        %v1029 = vceil.f32 %v1013
        %v1030 = vceil.f32 %v1014
        %v1031 = vceil.f32 %v1015
        %v1032 = vceil.f32 %v1016
        %v1033 = vceil.f32 %v1017
        %v1034 = vceil.f32 %v1018
        %v1035 = vceil.f32 %v1019
        %v1036 = vcvt.f32.s32.to.zero.pseudo %v1020
        %v1037 = vcvt.f32.s32.to.zero.pseudo %v1021
        %v1038 = vcvt.f32.s32.to.zero.pseudo %v1022
        %v1039 = vcvt.f32.s32.to.zero.pseudo %v1023
        %v1040 = vcvt.f32.s32.to.zero.pseudo %v1024
        %v1041 = vcvt.f32.s32.to.zero.pseudo %v1025
        %v1042 = vcvt.f32.s32.to.zero.pseudo %v1026
        %v1043 = vcvt.f32.s32.to.zero.pseudo %v1027
        %v1044 = vcvt.f32.s32.to.zero.pseudo %v1028
        %v1045 = vcvt.f32.s32.to.zero.pseudo %v1029
        %v1046 = vcvt.f32.s32.to.zero.pseudo %v1030
        %v1047 = vcvt.f32.s32.to.zero.pseudo %v1031
        %v1048 = vcvt.f32.s32.to.zero.pseudo %v1032
        %v1049 = vcvt.f32.s32.to.zero.pseudo %v1033
        %v1050 = vcvt.f32.s32.to.zero.pseudo %v1034
        %v1051 = vcvt.f32.s32.to.zero.pseudo %v1035
        %v1052 = vsub.s32 %v1036, 1
        %v1053 = vsub.s32 %v1037, 1
        %v1054 = vsub.s32 %v1038, 1
        %v1055 = vsub.s32 %v1039, 1
        %v1056 = vsub.s32 %v1040, 1
        %v1057 = vsub.s32 %v1041, 1
        %v1058 = vsub.s32 %v1042, 1
        %v1059 = vsub.s32 %v1043, 1
        %v1060 = vsub.s32 %v1044, 1
        %v1061 = vsub.s32 %v1045, 1
        %v1062 = vsub.s32 %v1046, 1
        %v1063 = vsub.s32 %v1047, 1
        %v1064 = vsub.s32 %v1048, 1
        %v1065 = vsub.s32 %v1049, 1
        %v1066 = vsub.s32 %v1050, 1
        %v1067 = vsub.s32 %v1051, 1
        %vm1068 = vcmp.gt.s32.totalorder %v1052, 0
        %v1069 = vsel %vm1068, %v1052, 0
        %vm1070 = vcmp.gt.s32.totalorder %v1053, 0
        %v1071 = vsel %vm1070, %v1053, 0
        %vm1072 = vcmp.gt.s32.totalorder %v1054, 0
        %v1073 = vsel %vm1072, %v1054, 0
        %vm1074 = vcmp.gt.s32.totalorder %v1055, 0
        %v1075 = vsel %vm1074, %v1055, 0
        %vm1076 = vcmp.gt.s32.totalorder %v1056, 0
        %v1077 = vsel %vm1076, %v1056, 0
        %vm1078 = vcmp.gt.s32.totalorder %v1057, 0
        %v1079 = vsel %vm1078, %v1057, 0
        %vm1080 = vcmp.gt.s32.totalorder %v1058, 0
        %v1081 = vsel %vm1080, %v1058, 0
        %vm1082 = vcmp.gt.s32.totalorder %v1059, 0
        %v1083 = vsel %vm1082, %v1059, 0
        %vm1084 = vcmp.gt.s32.totalorder %v1060, 0
        %v1085 = vsel %vm1084, %v1060, 0
        %vm1086 = vcmp.gt.s32.totalorder %v1061, 0
        %v1087 = vsel %vm1086, %v1061, 0
        %vm1088 = vcmp.gt.s32.totalorder %v1062, 0
        %v1089 = vsel %vm1088, %v1062, 0
        %vm1090 = vcmp.gt.s32.totalorder %v1063, 0
        %v1091 = vsel %vm1090, %v1063, 0
        %vm1092 = vcmp.gt.s32.totalorder %v1064, 0
        %v1093 = vsel %vm1092, %v1064, 0
        %vm1094 = vcmp.gt.s32.totalorder %v1065, 0
        %v1095 = vsel %vm1094, %v1065, 0
        %vm1096 = vcmp.gt.s32.totalorder %v1066, 0
        %v1097 = vsel %vm1096, %v1066, 0
        %vm1098 = vcmp.gt.s32.totalorder %v1067, 0
        %v1099 = vsel %vm1098, %v1067, 0
        %vm1100 = vcmp.lt.s32.totalorder %v1069, 14
        %v1101 = vsel %vm1100, %v1069, 14
        %vm1102 = vcmp.lt.s32.totalorder %v1071, 14
        %v1103 = vsel %vm1102, %v1071, 14
        %vm1104 = vcmp.lt.s32.totalorder %v1073, 14
        %v1105 = vsel %vm1104, %v1073, 14
        %vm1106 = vcmp.lt.s32.totalorder %v1075, 14
        %v1107 = vsel %vm1106, %v1075, 14
        %vm1108 = vcmp.lt.s32.totalorder %v1077, 14
        %v1109 = vsel %vm1108, %v1077, 14
        %vm1110 = vcmp.lt.s32.totalorder %v1079, 14
        %v1111 = vsel %vm1110, %v1079, 14
        %vm1112 = vcmp.lt.s32.totalorder %v1081, 14
        %v1113 = vsel %vm1112, %v1081, 14
        %vm1114 = vcmp.lt.s32.totalorder %v1083, 14
        %v1115 = vsel %vm1114, %v1083, 14
        %vm1116 = vcmp.lt.s32.totalorder %v1085, 14
        %v1117 = vsel %vm1116, %v1085, 14
        %vm1118 = vcmp.lt.s32.totalorder %v1087, 14
        %v1119 = vsel %vm1118, %v1087, 14
        %vm1120 = vcmp.lt.s32.totalorder %v1089, 14
        %v1121 = vsel %vm1120, %v1089, 14
        %vm1122 = vcmp.lt.s32.totalorder %v1091, 14
        %v1123 = vsel %vm1122, %v1091, 14
        %vm1124 = vcmp.lt.s32.totalorder %v1093, 14
        %v1125 = vsel %vm1124, %v1093, 14
        %vm1126 = vcmp.lt.s32.totalorder %v1095, 14
        %v1127 = vsel %vm1126, %v1095, 14
        %vm1128 = vcmp.lt.s32.totalorder %v1097, 14
        %v1129 = vsel %vm1128, %v1097, 14
        %vm1130 = vcmp.lt.s32.totalorder %v1099, 14
        %v1131 = vsel %vm1130, %v1099, 14
        %vm1132 = vcmp.eq.s32.totalorder %v263, %v1101
        %vm1133 = vcmp.eq.s32.totalorder %v263, %v1103
        %vm1134 = vcmp.eq.s32.totalorder %v263, %v1105
        %vm1135 = vcmp.eq.s32.totalorder %v263, %v1107
        %vm1136 = vcmp.eq.s32.totalorder %v263, %v1109
        %vm1137 = vcmp.eq.s32.totalorder %v263, %v1111
        %vm1138 = vcmp.eq.s32.totalorder %v263, %v1113
        %vm1139 = vcmp.eq.s32.totalorder %v263, %v1115
        %vm1140 = vcmp.eq.s32.totalorder %v263, %v1117
        %vm1141 = vcmp.eq.s32.totalorder %v263, %v1119
        %vm1142 = vcmp.eq.s32.totalorder %v263, %v1121
        %vm1143 = vcmp.eq.s32.totalorder %v263, %v1123
        %vm1144 = vcmp.eq.s32.totalorder %v263, %v1125
        %vm1145 = vcmp.eq.s32.totalorder %v263, %v1127
        %vm1146 = vcmp.eq.s32.totalorder %v263, %v1129
        %vm1147 = vcmp.eq.s32.totalorder %v263, %v1131
        %v1148 = vsel %vm1132, 1, 0
        %v1149 = vsel %vm1133, 1, 0
        %v1150 = vsel %vm1134, 1, 0
        %v1151 = vsel %vm1135, 1, 0
        %v1152 = vsel %vm1136, 1, 0
        %v1153 = vsel %vm1137, 1, 0
        %v1154 = vsel %vm1138, 1, 0
        %v1155 = vsel %vm1139, 1, 0
        %v1156 = vsel %vm1140, 1, 0
        %v1157 = vsel %vm1141, 1, 0
        %v1158 = vsel %vm1142, 1, 0
        %v1159 = vsel %vm1143, 1, 0
        %v1160 = vsel %vm1144, 1, 0
        %v1161 = vsel %vm1145, 1, 0
        %v1162 = vsel %vm1146, 1, 0
        %v1163 = vsel %vm1147, 1, 0
        %v1164 = vcvt.s32.f32 %v1148
        %v1165 = vcvt.s32.f32 %v1149
        %v1166 = vcvt.s32.f32 %v1150
        %v1167 = vcvt.s32.f32 %v1151
        %v1168 = vcvt.s32.f32 %v1152
        %v1169 = vcvt.s32.f32 %v1153
        %v1170 = vcvt.s32.f32 %v1154
        %v1171 = vcvt.s32.f32 %v1155
        %v1172 = vcvt.s32.f32 %v1156
        %v1173 = vcvt.s32.f32 %v1157
        %v1174 = vcvt.s32.f32 %v1158
        %v1175 = vcvt.s32.f32 %v1159
        %v1176 = vcvt.s32.f32 %v1160
        %v1177 = vcvt.s32.f32 %v1161
        %v1178 = vcvt.s32.f32 %v1162
        %v1179 = vcvt.s32.f32 %v1163
        %vm1180 = vcmp.eq.s32.totalorder %v263, 0
        %vm1181 = vcmp.eq.s32.totalorder %v263, 1
        %v1182 = vmul.f32 %v645, %v988
        %v1183 = vmul.f32 %v659, %v989
        %v1184 = vmul.f32 %v673, %v990
        %v1185 = vmul.f32 %v687, %v991
        %v1186 = vmul.f32 %v701, %v992
        %v1187 = vmul.f32 %v715, %v993
        %v1188 = vmul.f32 %v729, %v994
        %v1189 = vmul.f32 %v743, %v995
        %v1190 = vmul.f32 %v757, %v996
        %v1191 = vmul.f32 %v771, %v997
        %v1192 = vmul.f32 %v785, %v998
        %v1193 = vmul.f32 %v799, %v999
        %v1194 = vmul.f32 %v813, %v1000
        %v1195 = vmul.f32 %v827, %v1001
        %v1196 = vmul.f32 %v841, %v1002
        %v1197 = vmul.f32 %v855, %v1003
        %vm1198 = vcmp.eq.s32.totalorder %v263, 2
        %v1199 = vmul.f32 %v904, %v988
        %v1200 = vmul.f32 %v905, %v989
        %v1201 = vmul.f32 %v906, %v990
        %v1202 = vmul.f32 %v907, %v991
        %v1203 = vmul.f32 %v908, %v992
        %v1204 = vmul.f32 %v909, %v993
        %v1205 = vmul.f32 %v910, %v994
        %v1206 = vmul.f32 %v911, %v995
        %v1207 = vmul.f32 %v912, %v996
        %v1208 = vmul.f32 %v913, %v997
        %v1209 = vmul.f32 %v914, %v998
        %v1210 = vmul.f32 %v915, %v999
        %v1211 = vmul.f32 %v916, %v1000
        %v1212 = vmul.f32 %v917, %v1001
        %v1213 = vmul.f32 %v918, %v1002
        %v1214 = vmul.f32 %v919, %v1003
        %1216 = vset.pattern.permute.xlu0 0
        %1217 = vperm.xlu0 %1216, %v1199
        %v1218 = vpop.permute.xlu0 %1217
        %1221 = vset.pattern.permute.xlu0 0
        %1222 = vperm.xlu0 %1221, %v1200
        %v1223 = vpop.permute.xlu0 %1222
        %1226 = vset.pattern.permute.xlu0 0
        %1227 = vperm.xlu0 %1226, %v1201
        %v1228 = vpop.permute.xlu0 %1227
        %1231 = vset.pattern.permute.xlu0 0
        %1232 = vperm.xlu0 %1231, %v1202
        %v1233 = vpop.permute.xlu0 %1232
        %1236 = vset.pattern.permute.xlu0 0
        %1237 = vperm.xlu0 %1236, %v1203
        %v1238 = vpop.permute.xlu0 %1237
        %1241 = vset.pattern.permute.xlu0 0
        %1242 = vperm.xlu0 %1241, %v1204
        %v1243 = vpop.permute.xlu0 %1242
        %1246 = vset.pattern.permute.xlu0 0
        %1247 = vperm.xlu0 %1246, %v1205
        %v1248 = vpop.permute.xlu0 %1247
        %1251 = vset.pattern.permute.xlu0 0
        %1252 = vperm.xlu0 %1251, %v1206
        %v1253 = vpop.permute.xlu0 %1252
        %1256 = vset.pattern.permute.xlu0 0
        %1257 = vperm.xlu0 %1256, %v1207
        %v1258 = vpop.permute.xlu0 %1257
        %1261 = vset.pattern.permute.xlu0 0
        %1262 = vperm.xlu0 %1261, %v1208
        %v1263 = vpop.permute.xlu0 %1262
        %1266 = vset.pattern.permute.xlu0 0
        %1267 = vperm.xlu0 %1266, %v1209
        %v1268 = vpop.permute.xlu0 %1267
        %1271 = vset.pattern.permute.xlu0 0
        %1272 = vperm.xlu0 %1271, %v1210
        %v1273 = vpop.permute.xlu0 %1272
        %1276 = vset.pattern.permute.xlu0 0
        %1277 = vperm.xlu0 %1276, %v1211
        %v1278 = vpop.permute.xlu0 %1277
        %1281 = vset.pattern.permute.xlu0 0
        %1282 = vperm.xlu0 %1281, %v1212
        %v1283 = vpop.permute.xlu0 %1282
        %1286 = vset.pattern.permute.xlu0 0
        %1287 = vperm.xlu0 %1286, %v1213
        %v1288 = vpop.permute.xlu0 %1287
        %1291 = vset.pattern.permute.xlu0 0
        %1292 = vperm.xlu0 %1291, %v1214
        %v1293 = vpop.permute.xlu0 %1292
        %v1295 = vsel %vm1198, %v1218, 0.0
        %v1296 = vsel %vm1198, %v1223, 0.0
        %v1297 = vsel %vm1198, %v1228, 0.0
        %v1298 = vsel %vm1198, %v1233, 0.0
        %v1299 = vsel %vm1198, %v1238, 0.0
        %v1300 = vsel %vm1198, %v1243, 0.0
        %v1301 = vsel %vm1198, %v1248, 0.0
        %v1302 = vsel %vm1198, %v1253, 0.0
        %v1303 = vsel %vm1198, %v1258, 0.0
        %v1304 = vsel %vm1198, %v1263, 0.0
        %v1305 = vsel %vm1198, %v1268, 0.0
        %v1306 = vsel %vm1198, %v1273, 0.0
        %v1307 = vsel %vm1198, %v1278, 0.0
        %v1308 = vsel %vm1198, %v1283, 0.0
        %v1309 = vsel %vm1198, %v1288, 0.0
        %v1310 = vsel %vm1198, %v1293, 0.0
        %v1311 = vsel %vm1181, %v1182, %v1295
        %v1312 = vsel %vm1181, %v1183, %v1296
        %v1313 = vsel %vm1181, %v1184, %v1297
        %v1314 = vsel %vm1181, %v1185, %v1298
        %v1315 = vsel %vm1181, %v1186, %v1299
        %v1316 = vsel %vm1181, %v1187, %v1300
        %v1317 = vsel %vm1181, %v1188, %v1301
        %v1318 = vsel %vm1181, %v1189, %v1302
        %v1319 = vsel %vm1181, %v1190, %v1303
        %v1320 = vsel %vm1181, %v1191, %v1304
        %v1321 = vsel %vm1181, %v1192, %v1305
        %v1322 = vsel %vm1181, %v1193, %v1306
        %v1323 = vsel %vm1181, %v1194, %v1307
        %v1324 = vsel %vm1181, %v1195, %v1308
        %v1325 = vsel %vm1181, %v1196, %v1309
        %v1326 = vsel %vm1181, %v1197, %v1310
        %v1327 = vsel %vm1180, %v988, %v1311
        %v1328 = vsel %vm1180, %v989, %v1312
        %v1329 = vsel %vm1180, %v990, %v1313
        %v1330 = vsel %vm1180, %v991, %v1314
        %v1331 = vsel %vm1180, %v992, %v1315
        %v1332 = vsel %vm1180, %v993, %v1316
        %v1333 = vsel %vm1180, %v994, %v1317
        %v1334 = vsel %vm1180, %v995, %v1318
        %v1335 = vsel %vm1180, %v996, %v1319
        %v1336 = vsel %vm1180, %v997, %v1320
        %v1337 = vsel %vm1180, %v998, %v1321
        %v1338 = vsel %vm1180, %v999, %v1322
        %v1339 = vsel %vm1180, %v1000, %v1323
        %v1340 = vsel %vm1180, %v1001, %v1324
        %v1341 = vsel %vm1180, %v1002, %v1325
        %v1342 = vsel %vm1180, %v1003, %v1326
        %1343 = vxpose.xlu0.b32.start [1/16] %v1327, 128
        %1344 = vxpose.xlu0.b32.cont [2/16] %v1328, 128
        %1345 = vxpose.xlu0.b32.cont [3/16] %v1329, 128
        %1346 = vxpose.xlu0.b32.cont [4/16] %v1330, 128
        %1347 = vxpose.xlu0.b32.cont [5/16] %v1331, 128
        %1348 = vxpose.xlu0.b32.cont [6/16] %v1332, 128
        %1349 = vxpose.xlu0.b32.cont [7/16] %v1333, 128
        %1350 = vxpose.xlu0.b32.cont [8/16] %v1334, 128
        %1351 = vxpose.xlu0.b32.cont [9/16] %v1335, 128
        %1352 = vxpose.xlu0.b32.cont [10/16] %v1336, 128
        %1353 = vxpose.xlu0.b32.cont [11/16] %v1337, 128
        %1354 = vxpose.xlu0.b32.cont [12/16] %v1338, 128
        %1355 = vxpose.xlu0.b32.cont [13/16] %v1339, 128
        %1356 = vxpose.xlu0.b32.cont [14/16] %v1340, 128
        %1357 = vxpose.xlu0.b32.cont [15/16] %v1341, 128
        %1358 = vxpose.xlu0.b32.end [16/16] %v1342, 128
        %v1359 = vpop.trf.xlu0
        %v1360 = vpop.trf.xlu0
        %v1361 = vpop.trf.xlu0
        %v1362 = vpop.trf.xlu0
        %v1363 = vpop.trf.xlu0
        %v1364 = vpop.trf.xlu0
        %v1365 = vpop.trf.xlu0
        %v1366 = vpop.trf.xlu0
        %v1367 = vpop.trf.xlu0
        %v1368 = vpop.trf.xlu0
        %v1369 = vpop.trf.xlu0
        %v1370 = vpop.trf.xlu0
        %v1371 = vpop.trf.xlu0
        %v1372 = vpop.trf.xlu0
        %v1373 = vpop.trf.xlu0
        %v1374 = vpop.trf.xlu0
        %1375 = vmatpush.msra.mxu0 %v1179
        %1376 = vmatpush.msra.mxu0 %v1178
        %1377 = vmatpush.msra.mxu0 %v1177
        %1378 = vmatpush.msra.mxu0 %v1176
        %1379 = vmatpush.msra.mxu0 %v1175
        %1380 = vmatpush.msra.mxu0 %v1174
        %1381 = vmatpush.msra.mxu0 %v1173
        %1382 = vmatpush.msra.mxu0 %v1172
        %1383 = vmatpush.msra.mxu0 %v1171
        %1384 = vmatpush.msra.mxu0 %v1170
        %1385 = vmatpush.msra.mxu0 %v1169
        %1386 = vmatpush.msra.mxu0 %v1168
        %1387 = vmatpush.msra.mxu0 %v1167
        %1388 = vmatpush.msra.mxu0 %v1166
        %1389 = vmatpush.msra.mxu0 %v1165
        %1390 = vmatpush.msra.mxu0 %v1164
        %1391 = vmatmul.f32.gmra.mxu0 %v1359
        %v1392 = vpop.f32.mrf.mxu0
        %v1393 = vadd.f32 0.0, %v1392
        %1394 = vdwg.mxu0
        %v1395 = vld [vmem:[%s175] sm:$0xff]
        %v1396 = vadd.f32 %v1395, %v1393
        %1397 = vst [vmem:[%s175] sm:$0xff] %v1396
        %s1398 = sand.u32 %s92, 1
        %s1399 = scalar_lea.sflag [#allocation3], %s1398
        %s1400 = sand.u32 %s92, 1
        %s1401 = smul.addr %s1400, 8
        %s1402 = scalar_lea.vmem [#allocation2], %s1401
        // Predicated region
        $region33: #{tpu_custom_call.1} parent=27 // pred_check
          %p1403 = pneg %p102
        $region34: #{tpu_custom_call.1} parent=27 // pred_check_branch
          %1405 = sbr.rel (%p1403) target = $region36
        $region35: #{tpu_custom_call.1} parent=27 // pred_region
          %1407 = vsyncadd %s1399, 0
          %s1408 = smul.addr %s20, 8
          %s1409 = scalar_lea.hbm %s2, %s1408
          %s1411 = sshll.u32 %s1402, 4
          %s1412 = int_to_ptr.vmem [resolvable:$true] %s1411
          %s1413 = sshll.u32 %s1409, 4
          %s1414 = int_to_ptr.hbm [resolvable:$true] %s1413
          %1416 = dma.vmem_to_hbm [thread:$0]  %s1412, 128, %s1414, %s1399
        $region36: #{tpu_custom_call.1} parent=27 // pred_fallthru
          _
      $region28: #{tpu_custom_call.1} parent=5 // pred_fallthru
        _
      %p1417 = scmp.le.s32.totalorder 2, %s11
      // Predicated region
      $region37: #{tpu_custom_call.1} parent=5 // pred_check
        %p1418 = pneg %p1417
      $region38: #{tpu_custom_call.1} parent=5 // pred_check_branch
        %1420 = sbr.rel (%p1418) target = $region40
      $region39: #{tpu_custom_call.1} parent=5 // pred_region
        %s1421 = ssub.s32 %s11, 2
        // Predicated region
        $region41: #{tpu_custom_call.1} parent=39 // pred_check
          %p1422 = pneg %p108
        $region42: #{tpu_custom_call.1} parent=39 // pred_check_branch
          %1424 = sbr.rel (%p1422) target = $region44
        $region43: #{tpu_custom_call.1} parent=39 // pred_region
          %s1425 = sand.u32 %s93, 1
          %s1426 = scalar_lea.sflag [#allocation3], %s1425
          %s1427 = sand.u32 %s93, 1
          %s1428 = smul.addr %s1427, 8
          %s1429 = scalar_lea.vmem [#allocation2], %s1428
          %1431 = dma.done %s1426, 128
        $region44: #{tpu_custom_call.1} parent=39 // pred_fallthru
          _
      $region40: #{tpu_custom_call.1} parent=5 // pred_fallthru
        _
    $region6: #{tpu_custom_call.1} parent=1 // loop_footer
      %s15 = sadd.s32 1, %s11
    $region7: #{tpu_custom_call.1} parent=1 // loop_footer_branch
      %10 = sbr.rel target = $region3
    $region8: #{tpu_custom_call.1} parent=1 // loop_exit
      _
    %1432 = vsyncpa [#allocation3], 1
    %s1433 = scalar_lea.sflag [#allocation3], 1
    %1434 = vsyncpa %s1433, 1

</llo_original>
